<compile_context>
chip_gen: v7x
topology: tpu7x:2x2x1
jax: 0.10.0
libtpu: 0.0.40
codegen_flags: <defaults>
</compile_context>

<pallas_src>
import math

import jax
import jax.numpy as jnp
from jax.experimental import pallas as pl
from jax.experimental.pallas import tpu as pltpu

INPUT_SIZE = 784
HIDDEN = 100
HPAD = 128            # lane-dense padded hidden size
NUM_CLASSES = 10
TIMESTEPS = 5
MAX_FUSED_BATCH = 4096  # whole-batch-resident design; ~8.3 KiB/row -> ~34 MiB at 4096

LOG_SQRT_2PI = 0.5 * math.log(2.0 * math.pi)


# ---------------------------------------------------------------------------
# Fused kernel: x @ W_ih^T + bias, 5-step RNNCell(tanh) recurrence with
# RegularityEN NML rescaling, Linear head, log_softmax.
# ---------------------------------------------------------------------------
def fused_kernel(x_ref, wih_ref, whh_ref, bias_ref, wout_ref, bout_ref,
                 out_ref, mean_ref, std_ref, comp_ref, l_ref):
    B = x_ref.shape[0]
    n = jnp.float32(B * HIDDEN)                      # real element count (pad lanes excluded)
    log_sqrt_2pi = jnp.float32(LOG_SQRT_2PI)

    # ---- Stage 1 fused: cast x to bf16 in-kernel, single MXU matmul, f32 accumulate.
    # wih/bias pad lanes are zero, so ih pad lanes are exactly 0.
    x_bf16 = x_ref[...].astype(jnp.bfloat16)
    ih = jnp.dot(x_bf16, wih_ref[...], preferred_element_type=jnp.float32) + bias_ref[...]

    whh = whh_ref[...]                                # [HPAD, HPAD] bf16, zero-padded

    # Lane mask for the p-sum only (hoisted out of the step loop; JAX does not CSE
    # broadcasts).  h_new itself is exactly 0 in pad lanes, so s1/s2 need no mask.
    lane_mask = (jax.lax.broadcasted_iota(jnp.int32, (B, HPAD), 1) < HIDDEN).astype(jnp.float32)

    h = None                                          # scaled hidden carried between steps
    for t in range(TIMESTEPS):
        # ---- nn.RNNCell(tanh); h0 == 0 so the first step skips the h @ Whh matmul ----
        if t == 0:
            pre = ih
        else:
            pre = ih + jnp.dot(h.astype(jnp.bfloat16), whh,
                               preferred_element_type=jnp.float32)
        h_new = jnp.tanh(pre)                         # [B, HPAD]; pad lanes == 0

        # ---- global stats: two full reductions, one-pass unbiased variance ----
        s1 = jnp.sum(h_new)
        s2 = jnp.sum(h_new * h_new)
        mu = s1 / n
        var = (s2 - s1 * mu) / (n - jnp.float32(1.0))
        sigma = jnp.sqrt(var)                         # reporting only (off logp chain)

        # ---- Normal(mu, sigma).log_prob + RegularityEN without the max(logp) pass ----
        # logp = -d^2/(2 var) - c  with  c = 0.5*log(var) + log(sqrt(2 pi));
        # exponent of p is <= 0, so p in (0, 1] and the sum is stable as-is.
        d = h_new - mu
        p = jnp.exp(d * d * (jnp.float32(-0.5) / var))
        s_p = jnp.sum(p * lane_mask)                  # exclude pad lanes (d = -mu there)
        c = jnp.float32(0.5) * jnp.log(var) + log_sqrt_2pi
        lse = jnp.log(s_p) - c                        # == logsumexp(logp) == sum_p_x_thetax

        # COMP0 == 0 each step (x_history_stack is None), so both reference branches
        # collapse to logaddexp(lse, 0); compute it stably from scalars.
        mm = jnp.maximum(lse, jnp.float32(0.0))
        comp_new = mm + jnp.log(jnp.exp(lse - mm) + jnp.exp(-mm))

        l_nml = comp_new - lse
        h = l_nml * h_new                             # scaled hidden fed forward

        # per-step bookkeeping (scalars -> SMEM)
        mean_ref[t] = mu
        std_ref[t] = sigma
        comp_ref[t] = comp_new
        l_ref[t] = l_nml

    # ---- Linear(100, num_classes) + log_softmax(dim=1) ----
    # wout pad rows are zero (and h pad lanes are zero), so padding is inert here.
    logits = jnp.dot(h, wout_ref[...], preferred_element_type=jnp.float32) + bout_ref[...]
    lmax = jnp.max(logits, axis=1, keepdims=True)
    shifted = logits - lmax
    out_ref[...] = shifted - jnp.log(jnp.sum(jnp.exp(shifted), axis=1, keepdims=True))


def rnnrn_uam_forward(x, params):
    """x: [B, 1, 28, 28] or [B, 784].  Returns (out, x_history_stack, COMP_stack, MDL)."""
    w_ih, w_hh, b_ih, b_hh, w_out, b_out = params
    x2d = x.reshape(-1, INPUT_SIZE).astype(jnp.float32)
    B = x2d.shape[0]

    if B > MAX_FUSED_BATCH:
        # TODO(synk): chunked large-batch recurrence (emit_pipeline / CORE_PARALLEL)
        # not implemented; the whole batch must be VMEM-resident in this kernel.
        raise NotImplementedError(f"batch {B} > supported ceiling {MAX_FUSED_BATCH}")

    # Lane-dense (HPAD=128) zero-padded weights.  Zero pad lanes keep h_new exactly 0
    # in the 28 pad lanes through every matmul / tanh, so only sum(p) is masked in-kernel.
    wih_p = jnp.zeros((INPUT_SIZE, HPAD), jnp.bfloat16)
    wih_p = wih_p.at[:, :HIDDEN].set(jnp.transpose(w_ih).astype(jnp.bfloat16))
    whh_p = jnp.zeros((HPAD, HPAD), jnp.bfloat16)
    whh_p = whh_p.at[:HIDDEN, :HIDDEN].set(jnp.transpose(w_hh).astype(jnp.bfloat16))
    bias_p = jnp.zeros((1, HPAD), jnp.float32)
    bias_p = bias_p.at[:, :HIDDEN].set((b_ih + b_hh).reshape(1, HIDDEN).astype(jnp.float32))
    wout_p = jnp.zeros((HPAD, NUM_CLASSES), jnp.float32)
    wout_p = wout_p.at[:HIDDEN, :].set(jnp.transpose(w_out).astype(jnp.float32))
    bout2d = b_out.reshape(1, NUM_CLASSES).astype(jnp.float32)

    # VMEM budget: x (f32) + ~10 live [B, HPAD] f32 temporaries across the unrolled
    # steps + ~0.5 MiB of weights.  Raise the scoped limit accordingly (cap at v7x's
    # 64 MiB physical VMEM).
    est_bytes = B * (INPUT_SIZE * 4 + 10 * HPAD * 4) + (2 << 20)
    vmem_limit = int(min(64 << 20, max(32 << 20, est_bytes)))

    out, means, stds, comps, ls = pl.pallas_call(
        fused_kernel,
        out_shape=(
            jax.ShapeDtypeStruct((B, NUM_CLASSES), jnp.float32),
            jax.ShapeDtypeStruct((TIMESTEPS,), jnp.float32),
            jax.ShapeDtypeStruct((TIMESTEPS,), jnp.float32),
            jax.ShapeDtypeStruct((TIMESTEPS,), jnp.float32),
            jax.ShapeDtypeStruct((TIMESTEPS,), jnp.float32),
        ),
        in_specs=[pl.BlockSpec(memory_space=pltpu.MemorySpace.VMEM)] * 6,
        out_specs=(
            pl.BlockSpec(memory_space=pltpu.MemorySpace.VMEM),
            pl.BlockSpec(memory_space=pltpu.MemorySpace.SMEM),
            pl.BlockSpec(memory_space=pltpu.MemorySpace.SMEM),
            pl.BlockSpec(memory_space=pltpu.MemorySpace.SMEM),
            pl.BlockSpec(memory_space=pltpu.MemorySpace.SMEM),
        ),
        compiler_params=pltpu.CompilerParams(vmem_limit_bytes=vmem_limit),
    )(x2d, wih_p, whh_p, bias_p, wout_p, bout2d)

    numel = float(B * HIDDEN)
    # Rebuild the module's return structure (first entries are -1 because inputRN=False).
    x_history_stack = [-1] + [[means[t], stds[t], numel] for t in range(TIMESTEPS)]
    COMP_stack = [-1] + [comps[t] for t in range(TIMESTEPS)]
    MDL = [-1] + [ls[t] for t in range(TIMESTEPS)]
    return out, x_history_stack, COMP_stack, MDL


def init_params(key):
    """Deterministic init mimicking PyTorch RNNCell / Linear uniform(-1/sqrt(fan), +)."""
    k_rnn = 1.0 / jnp.sqrt(jnp.float32(HIDDEN))
    k_lin = 1.0 / jnp.sqrt(jnp.float32(HIDDEN))
    ks = jax.random.split(key, 6)
    w_ih = jax.random.uniform(ks[0], (HIDDEN, INPUT_SIZE), jnp.float32, -k_rnn, k_rnn)
    w_hh = jax.random.uniform(ks[1], (HIDDEN, HIDDEN), jnp.float32, -k_rnn, k_rnn)
    b_ih = jax.random.uniform(ks[2], (HIDDEN,), jnp.float32, -k_rnn, k_rnn)
    b_hh = jax.random.uniform(ks[3], (HIDDEN,), jnp.float32, -k_rnn, k_rnn)
    w_out = jax.random.uniform(ks[4], (NUM_CLASSES, HIDDEN), jnp.float32, -k_lin, k_lin)
    b_out = jax.random.uniform(ks[5], (NUM_CLASSES,), jnp.float32, -k_lin, k_lin)
    return (w_ih, w_hh, b_ih, b_hh, w_out, b_out)


if __name__ == "__main__":
    key = jax.random.PRNGKey(0)
    pkey, xkey = jax.random.split(key)
    params = init_params(pkey)

    # Small MNIST-like input: batch=2, NCHW [2, 1, 28, 28] -> 784 features.
    x = jax.random.normal(xkey, (2, 1, 28, 28), jnp.float32)

    out, x_hist, comp_stack, mdl = rnnrn_uam_forward(x, params)
    jax.block_until_ready(out)
    jax.block_until_ready(comp_stack[-1])
    jax.block_until_ready(mdl[-1])
    print("KERNEL_OK")
</pallas_src>

<mosaic_0001>
module attributes {stable_mosaic.version = 11 : i64} {
  func.func @fused_kernel(%arg0: memref<2x784xf32, #tpu.memory_space<vmem>>, %arg1: memref<784x128xbf16, #tpu.memory_space<vmem>>, %arg2: memref<128x128xbf16, #tpu.memory_space<vmem>>, %arg3: memref<1x128xf32, #tpu.memory_space<vmem>>, %arg4: memref<128x10xf32, #tpu.memory_space<vmem>>, %arg5: memref<1x10xf32, #tpu.memory_space<vmem>>, %arg6: memref<2x10xf32, #tpu.memory_space<vmem>>, %arg7: memref<5xf32, #tpu.memory_space<smem>>, %arg8: memref<5xf32, #tpu.memory_space<smem>>, %arg9: memref<5xf32, #tpu.memory_space<smem>>, %arg10: memref<5xf32, #tpu.memory_space<smem>>) attributes {dimension_semantics = [], scalar_prefetch = 0 : i64, scratch_operands = 0 : i64, tpu.core_type = #tpu.core_type<tc>} {
    %c0 = arith.constant 0 : index
    %c0_0 = arith.constant 0 : index
    %0 = vector.load %arg0[%c0, %c0_0] : memref<2x784xf32, #tpu.memory_space<vmem>>, vector<2x784xf32>
    %1 = arith.truncf %0 : vector<2x784xf32> to vector<2x784xbf16>
    %c0_1 = arith.constant 0 : index
    %c0_2 = arith.constant 0 : index
    %2 = vector.load %arg1[%c0_1, %c0_2] : memref<784x128xbf16, #tpu.memory_space<vmem>>, vector<784x128xbf16>
    %cst = arith.constant dense<0.000000e+00> : vector<2x128xf32>
    %3 = tpu.matmul %1, %2, %cst {dimension_numbers = #tpu.dot_dimension_numbers<[1], [0], [0], [1], [0, 0, 1, 1], [], []>} : vector<2x784xbf16>, vector<784x128xbf16>, vector<2x128xf32> -> vector<2x128xf32>
    %c0_3 = arith.constant 0 : index
    %c0_4 = arith.constant 0 : index
    %4 = vector.load %arg3[%c0_3, %c0_4] : memref<1x128xf32, #tpu.memory_space<vmem>>, vector<1x128xf32>
    %5 = vector.broadcast %4 : vector<1x128xf32> to vector<2x128xf32>
    %6 = arith.addf %3, %5 : vector<2x128xf32>
    %c0_5 = arith.constant 0 : index
    %c0_6 = arith.constant 0 : index
    %7 = vector.load %arg2[%c0_5, %c0_6] : memref<128x128xbf16, #tpu.memory_space<vmem>>, vector<128x128xbf16>
    %8 = tpu.iota {dimensions = array<i32: 1>} : vector<2x128xi32>
    %c100_i32 = arith.constant 100 : i32
    %9 = vector.broadcast %c100_i32 : i32 to vector<2x128xi32>
    %10 = arith.cmpi slt, %8, %9 : vector<2x128xi32>
    %11 = arith.extui %10 : vector<2x128xi1> to vector<2x128xi32>
    %12 = arith.sitofp %11 : vector<2x128xi32> to vector<2x128xf32>
    %13 = math.tanh %6 : vector<2x128xf32>
    %14 = vector.shape_cast %13 : vector<2x128xf32> to vector<1x2x128xf32>
    %cst_7 = arith.constant dense<0.000000e+00> : vector<1xf32>
    %15 = vector.multi_reduction <add>, %14, %cst_7 [1, 2] : vector<1x2x128xf32> to vector<1xf32>
    %16 = vector.shape_cast %15 : vector<1xf32> to vector<1x1x1xf32>
    %17 = vector.extract %16[0, 0, 0] : f32 from vector<1x1x1xf32>
    %18 = arith.mulf %13, %13 : vector<2x128xf32>
    %19 = vector.shape_cast %18 : vector<2x128xf32> to vector<1x2x128xf32>
    %cst_8 = arith.constant dense<0.000000e+00> : vector<1xf32>
    %20 = vector.multi_reduction <add>, %19, %cst_8 [1, 2] : vector<1x2x128xf32> to vector<1xf32>
    %21 = vector.shape_cast %20 : vector<1xf32> to vector<1x1x1xf32>
    %22 = vector.extract %21[0, 0, 0] : f32 from vector<1x1x1xf32>
    %cst_9 = arith.constant 2.000000e+02 : f32
    %23 = arith.divf %17, %cst_9 : f32
    %24 = arith.mulf %17, %23 : f32
    %25 = arith.subf %22, %24 : f32
    %cst_10 = arith.constant 2.000000e+02 : f32
    %cst_11 = arith.constant 1.000000e+00 : f32
    %26 = arith.subf %cst_10, %cst_11 : f32
    %27 = arith.divf %25, %26 : f32
    %28 = math.sqrt %27 : f32
    %29 = vector.broadcast %23 : f32 to vector<2x128xf32>
    %30 = arith.subf %13, %29 : vector<2x128xf32>
    %31 = arith.mulf %30, %30 : vector<2x128xf32>
    %cst_12 = arith.constant -5.000000e-01 : f32
    %32 = arith.divf %cst_12, %27 : f32
    %33 = vector.broadcast %32 : f32 to vector<2x128xf32>
    %34 = arith.mulf %31, %33 : vector<2x128xf32>
    %35 = math.exp %34 : vector<2x128xf32>
    %36 = arith.mulf %35, %12 : vector<2x128xf32>
    %37 = vector.shape_cast %36 : vector<2x128xf32> to vector<1x2x128xf32>
    %cst_13 = arith.constant dense<0.000000e+00> : vector<1xf32>
    %38 = vector.multi_reduction <add>, %37, %cst_13 [1, 2] : vector<1x2x128xf32> to vector<1xf32>
    %39 = vector.shape_cast %38 : vector<1xf32> to vector<1x1x1xf32>
    %40 = vector.extract %39[0, 0, 0] : f32 from vector<1x1x1xf32>
    %41 = math.log %27 : f32
    %cst_14 = arith.constant 5.000000e-01 : f32
    %42 = arith.mulf %cst_14, %41 : f32
    %cst_15 = arith.constant 0.918938517 : f32
    %43 = arith.addf %42, %cst_15 : f32
    %44 = math.log %40 : f32
    %45 = arith.subf %44, %43 : f32
    %cst_16 = arith.constant 0.000000e+00 : f32
    %46 = arith.maximumf %45, %cst_16 : f32
    %47 = arith.subf %45, %46 : f32
    %48 = math.exp %47 : f32
    %cst_17 = arith.constant 0.000000e+00 : f32
    %49 = arith.subf %cst_17, %46 : f32
    %50 = math.exp %49 : f32
    %51 = arith.addf %48, %50 : f32
    %52 = math.log %51 : f32
    %53 = arith.addf %46, %52 : f32
    %54 = arith.subf %53, %45 : f32
    %55 = vector.broadcast %54 : f32 to vector<2x128xf32>
    %56 = arith.mulf %55, %13 : vector<2x128xf32>
    %c0_18 = arith.constant 0 : index
    %57 = memref.load %arg7[%c0_18] : memref<5xf32, #tpu.memory_space<smem>>
    memref.store %23, %arg7[%c0_18] : memref<5xf32, #tpu.memory_space<smem>>
    %c0_19 = arith.constant 0 : index
    %58 = memref.load %arg8[%c0_19] : memref<5xf32, #tpu.memory_space<smem>>
    memref.store %28, %arg8[%c0_19] : memref<5xf32, #tpu.memory_space<smem>>
    %c0_20 = arith.constant 0 : index
    %59 = memref.load %arg9[%c0_20] : memref<5xf32, #tpu.memory_space<smem>>
    memref.store %53, %arg9[%c0_20] : memref<5xf32, #tpu.memory_space<smem>>
    %c0_21 = arith.constant 0 : index
    %60 = memref.load %arg10[%c0_21] : memref<5xf32, #tpu.memory_space<smem>>
    memref.store %54, %arg10[%c0_21] : memref<5xf32, #tpu.memory_space<smem>>
    %61 = arith.truncf %56 : vector<2x128xf32> to vector<2x128xbf16>
    %cst_22 = arith.constant dense<0.000000e+00> : vector<2x128xf32>
    %62 = tpu.matmul %61, %7, %cst_22 {dimension_numbers = #tpu.dot_dimension_numbers<[1], [0], [0], [1], [0, 0, 1, 1], [], []>} : vector<2x128xbf16>, vector<128x128xbf16>, vector<2x128xf32> -> vector<2x128xf32>
    %63 = arith.addf %6, %62 : vector<2x128xf32>
    %64 = math.tanh %63 : vector<2x128xf32>
    %65 = vector.shape_cast %64 : vector<2x128xf32> to vector<1x2x128xf32>
    %cst_23 = arith.constant dense<0.000000e+00> : vector<1xf32>
    %66 = vector.multi_reduction <add>, %65, %cst_23 [1, 2] : vector<1x2x128xf32> to vector<1xf32>
    %67 = vector.shape_cast %66 : vector<1xf32> to vector<1x1x1xf32>
    %68 = vector.extract %67[0, 0, 0] : f32 from vector<1x1x1xf32>
    %69 = arith.mulf %64, %64 : vector<2x128xf32>
    %70 = vector.shape_cast %69 : vector<2x128xf32> to vector<1x2x128xf32>
    %cst_24 = arith.constant dense<0.000000e+00> : vector<1xf32>
    %71 = vector.multi_reduction <add>, %70, %cst_24 [1, 2] : vector<1x2x128xf32> to vector<1xf32>
    %72 = vector.shape_cast %71 : vector<1xf32> to vector<1x1x1xf32>
    %73 = vector.extract %72[0, 0, 0] : f32 from vector<1x1x1xf32>
    %cst_25 = arith.constant 2.000000e+02 : f32
    %74 = arith.divf %68, %cst_25 : f32
    %75 = arith.mulf %68, %74 : f32
    %76 = arith.subf %73, %75 : f32
    %cst_26 = arith.constant 2.000000e+02 : f32
    %cst_27 = arith.constant 1.000000e+00 : f32
    %77 = arith.subf %cst_26, %cst_27 : f32
    %78 = arith.divf %76, %77 : f32
    %79 = math.sqrt %78 : f32
    %80 = vector.broadcast %74 : f32 to vector<2x128xf32>
    %81 = arith.subf %64, %80 : vector<2x128xf32>
    %82 = arith.mulf %81, %81 : vector<2x128xf32>
    %cst_28 = arith.constant -5.000000e-01 : f32
    %83 = arith.divf %cst_28, %78 : f32
    %84 = vector.broadcast %83 : f32 to vector<2x128xf32>
    %85 = arith.mulf %82, %84 : vector<2x128xf32>
    %86 = math.exp %85 : vector<2x128xf32>
    %87 = arith.mulf %86, %12 : vector<2x128xf32>
    %88 = vector.shape_cast %87 : vector<2x128xf32> to vector<1x2x128xf32>
    %cst_29 = arith.constant dense<0.000000e+00> : vector<1xf32>
    %89 = vector.multi_reduction <add>, %88, %cst_29 [1, 2] : vector<1x2x128xf32> to vector<1xf32>
    %90 = vector.shape_cast %89 : vector<1xf32> to vector<1x1x1xf32>
    %91 = vector.extract %90[0, 0, 0] : f32 from vector<1x1x1xf32>
    %92 = math.log %78 : f32
    %cst_30 = arith.constant 5.000000e-01 : f32
    %93 = arith.mulf %cst_30, %92 : f32
    %cst_31 = arith.constant 0.918938517 : f32
    %94 = arith.addf %93, %cst_31 : f32
    %95 = math.log %91 : f32
    %96 = arith.subf %95, %94 : f32
    %cst_32 = arith.constant 0.000000e+00 : f32
    %97 = arith.maximumf %96, %cst_32 : f32
    %98 = arith.subf %96, %97 : f32
    %99 = math.exp %98 : f32
    %cst_33 = arith.constant 0.000000e+00 : f32
    %100 = arith.subf %cst_33, %97 : f32
    %101 = math.exp %100 : f32
    %102 = arith.addf %99, %101 : f32
    %103 = math.log %102 : f32
    %104 = arith.addf %97, %103 : f32
    %105 = arith.subf %104, %96 : f32
    %106 = vector.broadcast %105 : f32 to vector<2x128xf32>
    %107 = arith.mulf %106, %64 : vector<2x128xf32>
    %c1 = arith.constant 1 : index
    %108 = memref.load %arg7[%c1] : memref<5xf32, #tpu.memory_space<smem>>
    memref.store %74, %arg7[%c1] : memref<5xf32, #tpu.memory_space<smem>>
    %c1_34 = arith.constant 1 : index
    %109 = memref.load %arg8[%c1_34] : memref<5xf32, #tpu.memory_space<smem>>
    memref.store %79, %arg8[%c1_34] : memref<5xf32, #tpu.memory_space<smem>>
    %c1_35 = arith.constant 1 : index
    %110 = memref.load %arg9[%c1_35] : memref<5xf32, #tpu.memory_space<smem>>
    memref.store %104, %arg9[%c1_35] : memref<5xf32, #tpu.memory_space<smem>>
    %c1_36 = arith.constant 1 : index
    %111 = memref.load %arg10[%c1_36] : memref<5xf32, #tpu.memory_space<smem>>
    memref.store %105, %arg10[%c1_36] : memref<5xf32, #tpu.memory_space<smem>>
    %112 = arith.truncf %107 : vector<2x128xf32> to vector<2x128xbf16>
    %cst_37 = arith.constant dense<0.000000e+00> : vector<2x128xf32>
    %113 = tpu.matmul %112, %7, %cst_37 {dimension_numbers = #tpu.dot_dimension_numbers<[1], [0], [0], [1], [0, 0, 1, 1], [], []>} : vector<2x128xbf16>, vector<128x128xbf16>, vector<2x128xf32> -> vector<2x128xf32>
    %114 = arith.addf %6, %113 : vector<2x128xf32>
    %115 = math.tanh %114 : vector<2x128xf32>
    %116 = vector.shape_cast %115 : vector<2x128xf32> to vector<1x2x128xf32>
    %cst_38 = arith.constant dense<0.000000e+00> : vector<1xf32>
    %117 = vector.multi_reduction <add>, %116, %cst_38 [1, 2] : vector<1x2x128xf32> to vector<1xf32>
    %118 = vector.shape_cast %117 : vector<1xf32> to vector<1x1x1xf32>
    %119 = vector.extract %118[0, 0, 0] : f32 from vector<1x1x1xf32>
    %120 = arith.mulf %115, %115 : vector<2x128xf32>
    %121 = vector.shape_cast %120 : vector<2x128xf32> to vector<1x2x128xf32>
    %cst_39 = arith.constant dense<0.000000e+00> : vector<1xf32>
    %122 = vector.multi_reduction <add>, %121, %cst_39 [1, 2] : vector<1x2x128xf32> to vector<1xf32>
    %123 = vector.shape_cast %122 : vector<1xf32> to vector<1x1x1xf32>
    %124 = vector.extract %123[0, 0, 0] : f32 from vector<1x1x1xf32>
    %cst_40 = arith.constant 2.000000e+02 : f32
    %125 = arith.divf %119, %cst_40 : f32
    %126 = arith.mulf %119, %125 : f32
    %127 = arith.subf %124, %126 : f32
    %cst_41 = arith.constant 2.000000e+02 : f32
    %cst_42 = arith.constant 1.000000e+00 : f32
    %128 = arith.subf %cst_41, %cst_42 : f32
    %129 = arith.divf %127, %128 : f32
    %130 = math.sqrt %129 : f32
    %131 = vector.broadcast %125 : f32 to vector<2x128xf32>
    %132 = arith.subf %115, %131 : vector<2x128xf32>
    %133 = arith.mulf %132, %132 : vector<2x128xf32>
    %cst_43 = arith.constant -5.000000e-01 : f32
    %134 = arith.divf %cst_43, %129 : f32
    %135 = vector.broadcast %134 : f32 to vector<2x128xf32>
    %136 = arith.mulf %133, %135 : vector<2x128xf32>
    %137 = math.exp %136 : vector<2x128xf32>
    %138 = arith.mulf %137, %12 : vector<2x128xf32>
    %139 = vector.shape_cast %138 : vector<2x128xf32> to vector<1x2x128xf32>
    %cst_44 = arith.constant dense<0.000000e+00> : vector<1xf32>
    %140 = vector.multi_reduction <add>, %139, %cst_44 [1, 2] : vector<1x2x128xf32> to vector<1xf32>
    %141 = vector.shape_cast %140 : vector<1xf32> to vector<1x1x1xf32>
    %142 = vector.extract %141[0, 0, 0] : f32 from vector<1x1x1xf32>
    %143 = math.log %129 : f32
    %cst_45 = arith.constant 5.000000e-01 : f32
    %144 = arith.mulf %cst_45, %143 : f32
    %cst_46 = arith.constant 0.918938517 : f32
    %145 = arith.addf %144, %cst_46 : f32
    %146 = math.log %142 : f32
    %147 = arith.subf %146, %145 : f32
    %cst_47 = arith.constant 0.000000e+00 : f32
    %148 = arith.maximumf %147, %cst_47 : f32
    %149 = arith.subf %147, %148 : f32
    %150 = math.exp %149 : f32
    %cst_48 = arith.constant 0.000000e+00 : f32
    %151 = arith.subf %cst_48, %148 : f32
    %152 = math.exp %151 : f32
    %153 = arith.addf %150, %152 : f32
    %154 = math.log %153 : f32
    %155 = arith.addf %148, %154 : f32
    %156 = arith.subf %155, %147 : f32
    %157 = vector.broadcast %156 : f32 to vector<2x128xf32>
    %158 = arith.mulf %157, %115 : vector<2x128xf32>
    %c2 = arith.constant 2 : index
    %159 = memref.load %arg7[%c2] : memref<5xf32, #tpu.memory_space<smem>>
    memref.store %125, %arg7[%c2] : memref<5xf32, #tpu.memory_space<smem>>
    %c2_49 = arith.constant 2 : index
    %160 = memref.load %arg8[%c2_49] : memref<5xf32, #tpu.memory_space<smem>>
    memref.store %130, %arg8[%c2_49] : memref<5xf32, #tpu.memory_space<smem>>
    %c2_50 = arith.constant 2 : index
    %161 = memref.load %arg9[%c2_50] : memref<5xf32, #tpu.memory_space<smem>>
    memref.store %155, %arg9[%c2_50] : memref<5xf32, #tpu.memory_space<smem>>
    %c2_51 = arith.constant 2 : index
    %162 = memref.load %arg10[%c2_51] : memref<5xf32, #tpu.memory_space<smem>>
    memref.store %156, %arg10[%c2_51] : memref<5xf32, #tpu.memory_space<smem>>
    %163 = arith.truncf %158 : vector<2x128xf32> to vector<2x128xbf16>
    %cst_52 = arith.constant dense<0.000000e+00> : vector<2x128xf32>
    %164 = tpu.matmul %163, %7, %cst_52 {dimension_numbers = #tpu.dot_dimension_numbers<[1], [0], [0], [1], [0, 0, 1, 1], [], []>} : vector<2x128xbf16>, vector<128x128xbf16>, vector<2x128xf32> -> vector<2x128xf32>
    %165 = arith.addf %6, %164 : vector<2x128xf32>
    %166 = math.tanh %165 : vector<2x128xf32>
    %167 = vector.shape_cast %166 : vector<2x128xf32> to vector<1x2x128xf32>
    %cst_53 = arith.constant dense<0.000000e+00> : vector<1xf32>
    %168 = vector.multi_reduction <add>, %167, %cst_53 [1, 2] : vector<1x2x128xf32> to vector<1xf32>
    %169 = vector.shape_cast %168 : vector<1xf32> to vector<1x1x1xf32>
    %170 = vector.extract %169[0, 0, 0] : f32 from vector<1x1x1xf32>
    %171 = arith.mulf %166, %166 : vector<2x128xf32>
    %172 = vector.shape_cast %171 : vector<2x128xf32> to vector<1x2x128xf32>
    %cst_54 = arith.constant dense<0.000000e+00> : vector<1xf32>
    %173 = vector.multi_reduction <add>, %172, %cst_54 [1, 2] : vector<1x2x128xf32> to vector<1xf32>
    %174 = vector.shape_cast %173 : vector<1xf32> to vector<1x1x1xf32>
    %175 = vector.extract %174[0, 0, 0] : f32 from vector<1x1x1xf32>
    %cst_55 = arith.constant 2.000000e+02 : f32
    %176 = arith.divf %170, %cst_55 : f32
    %177 = arith.mulf %170, %176 : f32
    %178 = arith.subf %175, %177 : f32
    %cst_56 = arith.constant 2.000000e+02 : f32
    %cst_57 = arith.constant 1.000000e+00 : f32
    %179 = arith.subf %cst_56, %cst_57 : f32
    %180 = arith.divf %178, %179 : f32
    %181 = math.sqrt %180 : f32
    %182 = vector.broadcast %176 : f32 to vector<2x128xf32>
    %183 = arith.subf %166, %182 : vector<2x128xf32>
    %184 = arith.mulf %183, %183 : vector<2x128xf32>
    %cst_58 = arith.constant -5.000000e-01 : f32
    %185 = arith.divf %cst_58, %180 : f32
    %186 = vector.broadcast %185 : f32 to vector<2x128xf32>
    %187 = arith.mulf %184, %186 : vector<2x128xf32>
    %188 = math.exp %187 : vector<2x128xf32>
    %189 = arith.mulf %188, %12 : vector<2x128xf32>
    %190 = vector.shape_cast %189 : vector<2x128xf32> to vector<1x2x128xf32>
    %cst_59 = arith.constant dense<0.000000e+00> : vector<1xf32>
    %191 = vector.multi_reduction <add>, %190, %cst_59 [1, 2] : vector<1x2x128xf32> to vector<1xf32>
    %192 = vector.shape_cast %191 : vector<1xf32> to vector<1x1x1xf32>
    %193 = vector.extract %192[0, 0, 0] : f32 from vector<1x1x1xf32>
    %194 = math.log %180 : f32
    %cst_60 = arith.constant 5.000000e-01 : f32
    %195 = arith.mulf %cst_60, %194 : f32
    %cst_61 = arith.constant 0.918938517 : f32
    %196 = arith.addf %195, %cst_61 : f32
    %197 = math.log %193 : f32
    %198 = arith.subf %197, %196 : f32
    %cst_62 = arith.constant 0.000000e+00 : f32
    %199 = arith.maximumf %198, %cst_62 : f32
    %200 = arith.subf %198, %199 : f32
    %201 = math.exp %200 : f32
    %cst_63 = arith.constant 0.000000e+00 : f32
    %202 = arith.subf %cst_63, %199 : f32
    %203 = math.exp %202 : f32
    %204 = arith.addf %201, %203 : f32
    %205 = math.log %204 : f32
    %206 = arith.addf %199, %205 : f32
    %207 = arith.subf %206, %198 : f32
    %208 = vector.broadcast %207 : f32 to vector<2x128xf32>
    %209 = arith.mulf %208, %166 : vector<2x128xf32>
    %c3 = arith.constant 3 : index
    %210 = memref.load %arg7[%c3] : memref<5xf32, #tpu.memory_space<smem>>
    memref.store %176, %arg7[%c3] : memref<5xf32, #tpu.memory_space<smem>>
    %c3_64 = arith.constant 3 : index
    %211 = memref.load %arg8[%c3_64] : memref<5xf32, #tpu.memory_space<smem>>
    memref.store %181, %arg8[%c3_64] : memref<5xf32, #tpu.memory_space<smem>>
    %c3_65 = arith.constant 3 : index
    %212 = memref.load %arg9[%c3_65] : memref<5xf32, #tpu.memory_space<smem>>
    memref.store %206, %arg9[%c3_65] : memref<5xf32, #tpu.memory_space<smem>>
    %c3_66 = arith.constant 3 : index
    %213 = memref.load %arg10[%c3_66] : memref<5xf32, #tpu.memory_space<smem>>
    memref.store %207, %arg10[%c3_66] : memref<5xf32, #tpu.memory_space<smem>>
    %214 = arith.truncf %209 : vector<2x128xf32> to vector<2x128xbf16>
    %cst_67 = arith.constant dense<0.000000e+00> : vector<2x128xf32>
    %215 = tpu.matmul %214, %7, %cst_67 {dimension_numbers = #tpu.dot_dimension_numbers<[1], [0], [0], [1], [0, 0, 1, 1], [], []>} : vector<2x128xbf16>, vector<128x128xbf16>, vector<2x128xf32> -> vector<2x128xf32>
    %216 = arith.addf %6, %215 : vector<2x128xf32>
    %217 = math.tanh %216 : vector<2x128xf32>
    %218 = vector.shape_cast %217 : vector<2x128xf32> to vector<1x2x128xf32>
    %cst_68 = arith.constant dense<0.000000e+00> : vector<1xf32>
    %219 = vector.multi_reduction <add>, %218, %cst_68 [1, 2] : vector<1x2x128xf32> to vector<1xf32>
    %220 = vector.shape_cast %219 : vector<1xf32> to vector<1x1x1xf32>
    %221 = vector.extract %220[0, 0, 0] : f32 from vector<1x1x1xf32>
    %222 = arith.mulf %217, %217 : vector<2x128xf32>
    %223 = vector.shape_cast %222 : vector<2x128xf32> to vector<1x2x128xf32>
    %cst_69 = arith.constant dense<0.000000e+00> : vector<1xf32>
    %224 = vector.multi_reduction <add>, %223, %cst_69 [1, 2] : vector<1x2x128xf32> to vector<1xf32>
    %225 = vector.shape_cast %224 : vector<1xf32> to vector<1x1x1xf32>
    %226 = vector.extract %225[0, 0, 0] : f32 from vector<1x1x1xf32>
    %cst_70 = arith.constant 2.000000e+02 : f32
    %227 = arith.divf %221, %cst_70 : f32
    %228 = arith.mulf %221, %227 : f32
    %229 = arith.subf %226, %228 : f32
    %cst_71 = arith.constant 2.000000e+02 : f32
    %cst_72 = arith.constant 1.000000e+00 : f32
    %230 = arith.subf %cst_71, %cst_72 : f32
    %231 = arith.divf %229, %230 : f32
    %232 = math.sqrt %231 : f32
    %233 = vector.broadcast %227 : f32 to vector<2x128xf32>
    %234 = arith.subf %217, %233 : vector<2x128xf32>
    %235 = arith.mulf %234, %234 : vector<2x128xf32>
    %cst_73 = arith.constant -5.000000e-01 : f32
    %236 = arith.divf %cst_73, %231 : f32
    %237 = vector.broadcast %236 : f32 to vector<2x128xf32>
    %238 = arith.mulf %235, %237 : vector<2x128xf32>
    %239 = math.exp %238 : vector<2x128xf32>
    %240 = arith.mulf %239, %12 : vector<2x128xf32>
    %241 = vector.shape_cast %240 : vector<2x128xf32> to vector<1x2x128xf32>
    %cst_74 = arith.constant dense<0.000000e+00> : vector<1xf32>
    %242 = vector.multi_reduction <add>, %241, %cst_74 [1, 2] : vector<1x2x128xf32> to vector<1xf32>
    %243 = vector.shape_cast %242 : vector<1xf32> to vector<1x1x1xf32>
    %244 = vector.extract %243[0, 0, 0] : f32 from vector<1x1x1xf32>
    %245 = math.log %231 : f32
    %cst_75 = arith.constant 5.000000e-01 : f32
    %246 = arith.mulf %cst_75, %245 : f32
    %cst_76 = arith.constant 0.918938517 : f32
    %247 = arith.addf %246, %cst_76 : f32
    %248 = math.log %244 : f32
    %249 = arith.subf %248, %247 : f32
    %cst_77 = arith.constant 0.000000e+00 : f32
    %250 = arith.maximumf %249, %cst_77 : f32
    %251 = arith.subf %249, %250 : f32
    %252 = math.exp %251 : f32
    %cst_78 = arith.constant 0.000000e+00 : f32
    %253 = arith.subf %cst_78, %250 : f32
    %254 = math.exp %253 : f32
    %255 = arith.addf %252, %254 : f32
    %256 = math.log %255 : f32
    %257 = arith.addf %250, %256 : f32
    %258 = arith.subf %257, %249 : f32
    %259 = vector.broadcast %258 : f32 to vector<2x128xf32>
    %260 = arith.mulf %259, %217 : vector<2x128xf32>
    %c4 = arith.constant 4 : index
    %261 = memref.load %arg7[%c4] : memref<5xf32, #tpu.memory_space<smem>>
    memref.store %227, %arg7[%c4] : memref<5xf32, #tpu.memory_space<smem>>
    %c4_79 = arith.constant 4 : index
    %262 = memref.load %arg8[%c4_79] : memref<5xf32, #tpu.memory_space<smem>>
    memref.store %232, %arg8[%c4_79] : memref<5xf32, #tpu.memory_space<smem>>
    %c4_80 = arith.constant 4 : index
    %263 = memref.load %arg9[%c4_80] : memref<5xf32, #tpu.memory_space<smem>>
    memref.store %257, %arg9[%c4_80] : memref<5xf32, #tpu.memory_space<smem>>
    %c4_81 = arith.constant 4 : index
    %264 = memref.load %arg10[%c4_81] : memref<5xf32, #tpu.memory_space<smem>>
    memref.store %258, %arg10[%c4_81] : memref<5xf32, #tpu.memory_space<smem>>
    %c0_82 = arith.constant 0 : index
    %c0_83 = arith.constant 0 : index
    %265 = vector.load %arg4[%c0_82, %c0_83] : memref<128x10xf32, #tpu.memory_space<vmem>>, vector<128x10xf32>
    %cst_84 = arith.constant dense<0.000000e+00> : vector<2x10xf32>
    %266 = tpu.matmul %260, %265, %cst_84 {dimension_numbers = #tpu.dot_dimension_numbers<[1], [0], [0], [1], [0, 0, 1, 1], [], []>} : vector<2x128xf32>, vector<128x10xf32>, vector<2x10xf32> -> vector<2x10xf32>
    %c0_85 = arith.constant 0 : index
    %c0_86 = arith.constant 0 : index
    %267 = vector.load %arg5[%c0_85, %c0_86] : memref<1x10xf32, #tpu.memory_space<vmem>>, vector<1x10xf32>
    %268 = vector.broadcast %267 : vector<1x10xf32> to vector<2x10xf32>
    %269 = arith.addf %266, %268 : vector<2x10xf32>
    %cst_87 = arith.constant dense<0xFF800000> : vector<2xf32>
    %270 = vector.multi_reduction <maximumf>, %269, %cst_87 [1] : vector<2x10xf32> to vector<2xf32>
    %271 = vector.shape_cast %270 : vector<2xf32> to vector<2x1xf32>
    %272 = vector.broadcast %271 : vector<2x1xf32> to vector<2x10xf32>
    %273 = arith.subf %269, %272 : vector<2x10xf32>
    %274 = math.exp %273 : vector<2x10xf32>
    %cst_88 = arith.constant dense<0.000000e+00> : vector<2xf32>
    %275 = vector.multi_reduction <add>, %274, %cst_88 [1] : vector<2x10xf32> to vector<2xf32>
    %276 = vector.shape_cast %275 : vector<2xf32> to vector<2x1xf32>
    %277 = math.log %276 : vector<2x1xf32>
    %278 = vector.broadcast %277 : vector<2x1xf32> to vector<2x10xf32>
    %279 = arith.subf %273, %278 : vector<2x10xf32>
    %c0_89 = arith.constant 0 : index
    %c0_90 = arith.constant 0 : index
    %280 = vector.load %arg6[%c0_89, %c0_90] : memref<2x10xf32, #tpu.memory_space<vmem>>, vector<2x10xf32>
    tpu.vector_store %arg6[%c0_89, %c0_90], %279 {strides = array<i32>} : memref<2x10xf32, #tpu.memory_space<vmem>>, vector<2x10xf32>,
    return
  }
}

</mosaic_0001>

<llo_original>
// kernel: tpu_custom_call.1
$region0: #{tpu_custom_call.1}
  #allocation0 [shape = 'u32[]', space=smem, size = 0x4, offset = 0x4, fixed_abs, tag = 'smem constant byte address 0x4 - core index']
  #allocation1 [shape = 'u32[144,128]{1,0:T(1,128)}', space=vmem, size = 0x12000, scoped, tag = 'internal scratch']
  %s0 = inlined_call_operand.vmem [shape: f32[2,784], index: 0, kind: input, shape index: {}]
  %s1 = inlined_call_operand.hbm [shape: bf16[784,128], index: 1, kind: input, shape index: {}]
  %s2 = inlined_call_operand.vmem [shape: bf16[128,128], index: 2, kind: input, shape index: {}]
  %s3 = inlined_call_operand.vmem [shape: f32[1,128], index: 3, kind: input, shape index: {}]
  %s4 = inlined_call_operand.vmem [shape: f32[128,10], index: 4, kind: input, shape index: {}]
  %s5 = inlined_call_operand.vmem [shape: f32[1,10], index: 5, kind: input, shape index: {}]
  %s6 = inlined_call_operand.hbm [shape: f32[2,10], index: 6, kind: output, shape index: {0}]
  %s7 = inlined_call_operand.hbm [shape: f32[5], index: 7, kind: output, shape index: {1}]
  %s8 = inlined_call_operand.hbm [shape: f32[5], index: 8, kind: output, shape index: {2}]
  %s9 = inlined_call_operand.hbm [shape: f32[5], index: 9, kind: output, shape index: {3}]
  %s10 = inlined_call_operand.hbm [shape: f32[5], index: 10, kind: output, shape index: {4}]
  %11 = xla_tuple %s6, %s7, %s8, %s9, %s10
  %s12 = sld [smem:[#allocation0]]
  $region70: #{tpu_custom_call.1} parent=0
    _
  %s14 = ssub.s32 1, %s12
  %s15 = scalar_select 0, %s14, %s12
  $region1: #{tpu_custom_call.1} parent=0
    #allocation2 [shape = 'u8[200704]{0}', space=vmem, size = 0x31000, scoped, tag = 'input window, operand 1, single buffered']
    #allocation3 [shape = 's32[1]{0}', space=sflag, size = 0x4, scoped, tag = 'scoped memory for tpu_custom_call.1']
    #allocation4 [shape = 's32[1]{0}', space=sflag, size = 0x4, scoped, tag = 'scoped memory for tpu_custom_call.1']
    #allocation5 [shape = 's32[1]{0}', space=sflag, size = 0x4, scoped, tag = 'scoped memory for tpu_custom_call.1']
    #allocation6 [shape = 'u8[1024]{0}', space=vmem, size = 0x400, scoped, tag = 'output window, operand 0, single buffered']
    #allocation7 [shape = 'u8[512]{0}', space=smem, size = 0x200, scoped, tag = 'output window, operand 1, single buffered']
    #allocation8 [shape = 'u8[512]{0}', space=smem, size = 0x200, scoped, tag = 'output window, operand 2, single buffered']
    #allocation9 [shape = 's32[1]{0}', space=sflag, size = 0x4, scoped, tag = 'scoped memory for tpu_custom_call.1']
    #allocation10 [shape = 'u8[512]{0}', space=smem, size = 0x200, scoped, tag = 'output window, operand 3, single buffered']
    #allocation11 [shape = 'u8[512]{0}', space=smem, size = 0x200, scoped, tag = 'output window, operand 4, single buffered']
    #allocation12 [shape = 's32[1]{0}', space=sflag, size = 0x4, scoped, tag = 'scoped memory for tpu_custom_call.1']
    %16 = vsyncpa [#allocation3], 0
    %17 = vsyncpa [#allocation4], 0
    %18 = vsyncpa [#allocation5], 0
    %19 = vsyncpa [#allocation9], 0
    %20 = vsyncpa [#allocation12], 0
    // Predicated region
    $region2: #{tpu_custom_call.1} parent=1 // pred_check
      _
    $region3: #{tpu_custom_call.1} parent=1 // pred_check_branch
      %22 = sbr.rel (0) target = $region5
    $region4: #{tpu_custom_call.1} parent=1 // pred_region
      _
    $region5: #{tpu_custom_call.1} parent=1 // pred_fallthru
      _
    // Predicated region
    $region6: #{tpu_custom_call.1} parent=1 // pred_check
      _
    $region7: #{tpu_custom_call.1} parent=1 // pred_check_branch
      %24 = sbr.rel (0) target = $region9
    $region8: #{tpu_custom_call.1} parent=1 // pred_region
      %s26 = ssub.s32 6272, 6272
      %27 = vsyncadd [#allocation3], %s26
      %s28 = sshll.u32 [#allocation2], 4
      %s29 = int_to_ptr.vmem [resolvable:$true] %s28
      %34 = dma.hbm_to_vmem [thread:$0]  %s1, 6272, %s29, [#allocation3], 64, 64, 4
    $region9: #{tpu_custom_call.1} parent=1 // pred_fallthru
      _
    // Predicated region
    $region10: #{tpu_custom_call.1} parent=1 // pred_check
      _
    $region11: #{tpu_custom_call.1} parent=1 // pred_check_branch
      %36 = sbr.rel (0) target = $region13
    $region12: #{tpu_custom_call.1} parent=1 // pred_region
      _
    $region13: #{tpu_custom_call.1} parent=1 // pred_fallthru
      _
    // Predicated region
    $region14: #{tpu_custom_call.1} parent=1 // pred_check
      _
    $region15: #{tpu_custom_call.1} parent=1 // pred_check_branch
      %38 = sbr.rel (0) target = $region17
    $region16: #{tpu_custom_call.1} parent=1 // pred_region
      _
    $region17: #{tpu_custom_call.1} parent=1 // pred_fallthru
      _
    // Predicated region
    $region18: #{tpu_custom_call.1} parent=1 // pred_check
      _
    $region19: #{tpu_custom_call.1} parent=1 // pred_check_branch
      %40 = sbr.rel (0) target = $region21
    $region20: #{tpu_custom_call.1} parent=1 // pred_region
      _
    $region21: #{tpu_custom_call.1} parent=1 // pred_fallthru
      _
    // Predicated region
    $region22: #{tpu_custom_call.1} parent=1 // pred_check
      _
    $region23: #{tpu_custom_call.1} parent=1 // pred_check_branch
      %42 = sbr.rel (0) target = $region25
    $region24: #{tpu_custom_call.1} parent=1 // pred_region
      _
    $region25: #{tpu_custom_call.1} parent=1 // pred_fallthru
      _
    // Predicated region
    $region26: #{tpu_custom_call.1} parent=1 // pred_check
      _
    $region27: #{tpu_custom_call.1} parent=1 // pred_check_branch
      %44 = sbr.rel (0) target = $region29
    $region28: #{tpu_custom_call.1} parent=1 // pred_region
      %45 = dma.done [#allocation3], 6272
    $region29: #{tpu_custom_call.1} parent=1 // pred_fallthru
      _
    %v47 = vld [vmem:[%s0] sm:$0xff]
    %v48 = vld [vmem:[%s0 + $0x8] sm:$0x3f]
    %v51 = vcombine.high %v47, %v47
    %v53 = vunpack.c.l.s4 1983009808
    %v54 = vunpack.c.0.s8 %v53
    %v55 = vlaneseq
    %v56 = vshrl.u32 %v55, 7
    %v57 = vsub.s32 %v54, %v56
    %v58 = vrot.slane %v47, %v57
    %v60 = vunpack.c.l.s4 1983009808
    %v61 = vunpack.c.0.s8 %v60
    %v62 = vlaneseq
    %v63 = vshrl.u32 %v62, 7
    %v64 = vsub.s32 %v61, %v63
    %v65 = vrot.slane %v51, %v64
    %v66 = vcombine.high %v58, %v58
    %v67 = vcombine.high %v65, %v65
    %v68 = vcombine.high %v48, %v48
    %v70 = vunpack.c.l.s4 1983009808
    %v71 = vunpack.c.0.s8 %v70
    %v72 = vlaneseq
    %v73 = vshrl.u32 %v72, 7
    %v74 = vsub.s32 %v71, %v73
    %v75 = vrot.slane %v48, %v74
    %v77 = vunpack.c.l.s4 1983009808
    %v78 = vunpack.c.0.s8 %v77
    %v79 = vlaneseq
    %v80 = vshrl.u32 %v79, 7
    %v81 = vsub.s32 %v78, %v80
    %v82 = vrot.slane %v68, %v81
    %v83 = vcombine.high %v75, %v75
    %v91 = vpack.c.bf16 %v58, %v58
    %v92 = vpack.c.bf16 %v66, %v66
    %v93 = vpack.c.bf16 %v65, %v65
    %v94 = vpack.c.bf16 %v67, %v67
    %v95 = vpack.c.bf16 %v75, %v75
    %v96 = vpack.c.bf16 %v83, %v83
    %v97 = vpack.c.bf16 %v82, %v82
    %v98 = vld [vmem:[#allocation2] sm:$0xf]
    %v99 = vld [vmem:[#allocation2 + $0x4] sm:$0xf]
    %v100 = vld [vmem:[#allocation2 + $0x8] sm:$0xf]
    %v101 = vld [vmem:[#allocation2 + $0xc] sm:$0xf]
    %v102 = vld [vmem:[#allocation2 + $0x10] sm:$0xf]
    %v103 = vld [vmem:[#allocation2 + $0x14] sm:$0xf]
    %v104 = vld [vmem:[#allocation2 + $0x18] sm:$0xf]
    %v105 = vld [vmem:[#allocation2 + $0x1c] sm:$0xf]
    %v106 = vld [vmem:[#allocation2 + $0x20] sm:$0xf]
    %v107 = vld [vmem:[#allocation2 + $0x24] sm:$0xf]
    %v108 = vld [vmem:[#allocation2 + $0x28] sm:$0xf]
    %v109 = vld [vmem:[#allocation2 + $0x2c] sm:$0xf]
    %v110 = vld [vmem:[#allocation2 + $0x30] sm:$0xf]
    %v111 = vld [vmem:[#allocation2 + $0x34] sm:$0xf]
    %v112 = vld [vmem:[#allocation2 + $0x38] sm:$0xf]
    %v113 = vld [vmem:[#allocation2 + $0x3c] sm:$0xf]
    %v114 = vld [vmem:[#allocation2 + $0x40] sm:$0xf]
    %v115 = vld [vmem:[#allocation2 + $0x44] sm:$0xf]
    %v116 = vld [vmem:[#allocation2 + $0x48] sm:$0xf]
    %v117 = vld [vmem:[#allocation2 + $0x4c] sm:$0xf]
    %v118 = vld [vmem:[#allocation2 + $0x50] sm:$0xf]
    %v119 = vld [vmem:[#allocation2 + $0x54] sm:$0xf]
    %v120 = vld [vmem:[#allocation2 + $0x58] sm:$0xf]
    %v121 = vld [vmem:[#allocation2 + $0x5c] sm:$0xf]
    %v122 = vld [vmem:[#allocation2 + $0x60] sm:$0xf]
    %v123 = vld [vmem:[#allocation2 + $0x64] sm:$0xf]
    %v124 = vld [vmem:[#allocation2 + $0x68] sm:$0xf]
    %v125 = vld [vmem:[#allocation2 + $0x6c] sm:$0xf]
    %v126 = vld [vmem:[#allocation2 + $0x70] sm:$0xf]
    %v127 = vld [vmem:[#allocation2 + $0x74] sm:$0xf]
    %v128 = vld [vmem:[#allocation2 + $0x78] sm:$0xf]
    %v129 = vld [vmem:[#allocation2 + $0x7c] sm:$0xf]
    %v130 = vld [vmem:[#allocation2 + $0x80] sm:$0xf]
    %v131 = vld [vmem:[#allocation2 + $0x84] sm:$0xf]
    %v132 = vld [vmem:[#allocation2 + $0x88] sm:$0xf]
    %v133 = vld [vmem:[#allocation2 + $0x8c] sm:$0xf]
    %v134 = vld [vmem:[#allocation2 + $0x90] sm:$0xf]
    %v135 = vld [vmem:[#allocation2 + $0x94] sm:$0xf]
    %v136 = vld [vmem:[#allocation2 + $0x98] sm:$0xf]
    %v137 = vld [vmem:[#allocation2 + $0x9c] sm:$0xf]
    %v138 = vld [vmem:[#allocation2 + $0xa0] sm:$0xf]
    %v139 = vld [vmem:[#allocation2 + $0xa4] sm:$0xf]
    %v140 = vld [vmem:[#allocation2 + $0xa8] sm:$0xf]
    %v141 = vld [vmem:[#allocation2 + $0xac] sm:$0xf]
    %v142 = vld [vmem:[#allocation2 + $0xb0] sm:$0xf]
    %v143 = vld [vmem:[#allocation2 + $0xb4] sm:$0xf]
    %v144 = vld [vmem:[#allocation2 + $0xb8] sm:$0xf]
    %v145 = vld [vmem:[#allocation2 + $0xbc] sm:$0xf]
    %v146 = vld [vmem:[#allocation2 + $0xc0] sm:$0xf]
    %v147 = vld [vmem:[#allocation2 + $0xc4] sm:$0xf]
    %v148 = vld [vmem:[#allocation2 + $0xc8] sm:$0xf]
    %v149 = vld [vmem:[#allocation2 + $0xcc] sm:$0xf]
    %v150 = vld [vmem:[#allocation2 + $0xd0] sm:$0xf]
    %v151 = vld [vmem:[#allocation2 + $0xd4] sm:$0xf]
    %v152 = vld [vmem:[#allocation2 + $0xd8] sm:$0xf]
    %v153 = vld [vmem:[#allocation2 + $0xdc] sm:$0xf]
    %v154 = vld [vmem:[#allocation2 + $0xe0] sm:$0xf]
    %v155 = vld [vmem:[#allocation2 + $0xe4] sm:$0xf]
    %v156 = vld [vmem:[#allocation2 + $0xe8] sm:$0xf]
    %v157 = vld [vmem:[#allocation2 + $0xec] sm:$0xf]
    %v158 = vld [vmem:[#allocation2 + $0xf0] sm:$0xf]
    %v159 = vld [vmem:[#allocation2 + $0xf4] sm:$0xf]
    %v160 = vld [vmem:[#allocation2 + $0xf8] sm:$0xf]
    %v161 = vld [vmem:[#allocation2 + $0xfc] sm:$0xf]
    %v162 = vld [vmem:[#allocation2 + $0x100] sm:$0xf]
    %v163 = vld [vmem:[#allocation2 + $0x104] sm:$0xf]
    %v164 = vld [vmem:[#allocation2 + $0x108] sm:$0xf]
    %v165 = vld [vmem:[#allocation2 + $0x10c] sm:$0xf]
    %v166 = vld [vmem:[#allocation2 + $0x110] sm:$0xf]
    %v167 = vld [vmem:[#allocation2 + $0x114] sm:$0xf]
    %v168 = vld [vmem:[#allocation2 + $0x118] sm:$0xf]
    %v169 = vld [vmem:[#allocation2 + $0x11c] sm:$0xf]
    %v170 = vld [vmem:[#allocation2 + $0x120] sm:$0xf]
    %v171 = vld [vmem:[#allocation2 + $0x124] sm:$0xf]
    %v172 = vld [vmem:[#allocation2 + $0x128] sm:$0xf]
    %v173 = vld [vmem:[#allocation2 + $0x12c] sm:$0xf]
    %v174 = vld [vmem:[#allocation2 + $0x130] sm:$0xf]
    %v175 = vld [vmem:[#allocation2 + $0x134] sm:$0xf]
    %v176 = vld [vmem:[#allocation2 + $0x138] sm:$0xf]
    %v177 = vld [vmem:[#allocation2 + $0x13c] sm:$0xf]
    %v178 = vld [vmem:[#allocation2 + $0x140] sm:$0xf]
    %v179 = vld [vmem:[#allocation2 + $0x144] sm:$0xf]
    %v180 = vld [vmem:[#allocation2 + $0x148] sm:$0xf]
    %v181 = vld [vmem:[#allocation2 + $0x14c] sm:$0xf]
    %v182 = vld [vmem:[#allocation2 + $0x150] sm:$0xf]
    %v183 = vld [vmem:[#allocation2 + $0x154] sm:$0xf]
    %v184 = vld [vmem:[#allocation2 + $0x158] sm:$0xf]
    %v185 = vld [vmem:[#allocation2 + $0x15c] sm:$0xf]
    %v186 = vld [vmem:[#allocation2 + $0x160] sm:$0xf]
    %v187 = vld [vmem:[#allocation2 + $0x164] sm:$0xf]
    %v188 = vld [vmem:[#allocation2 + $0x168] sm:$0xf]
    %v189 = vld [vmem:[#allocation2 + $0x16c] sm:$0xf]
    %v190 = vld [vmem:[#allocation2 + $0x170] sm:$0xf]
    %v191 = vld [vmem:[#allocation2 + $0x174] sm:$0xf]
    %v192 = vld [vmem:[#allocation2 + $0x178] sm:$0xf]
    %v193 = vld [vmem:[#allocation2 + $0x17c] sm:$0xf]
    %v194 = vld [vmem:[#allocation2 + $0x180] sm:$0xf]
    %v195 = vld [vmem:[#allocation2 + $0x184] sm:$0xf]
    %v196 = vld [vmem:[%s3] sm:$0x1]
    %v198 = vlaneseq
    %v199 = vshrl.u32 %v198, 7
    %v200 = vsub.s32 0, %v199
    %v201 = vrot.slane %v196, %v200
    %v301 = vunpack.c.l.b16 %v98
    %v302 = vunpack.c.l.b16 %v99
    %v303 = vunpack.c.l.b16 %v100
    %v304 = vunpack.c.l.b16 %v101
    %v305 = vunpack.c.l.b16 %v102
    %v306 = vunpack.c.l.b16 %v103
    %v307 = vunpack.c.l.b16 %v104
    %v308 = vunpack.c.l.b16 %v105
    %v309 = vunpack.c.l.b16 %v106
    %v310 = vunpack.c.l.b16 %v107
    %v311 = vunpack.c.l.b16 %v108
    %v312 = vunpack.c.l.b16 %v109
    %v313 = vunpack.c.l.b16 %v110
    %v314 = vunpack.c.l.b16 %v111
    %v315 = vunpack.c.l.b16 %v112
    %v316 = vunpack.c.l.b16 %v113
    %v317 = vunpack.c.l.b16 %v114
    %v318 = vunpack.c.l.b16 %v115
    %v319 = vunpack.c.l.b16 %v116
    %v320 = vunpack.c.l.b16 %v117
    %v321 = vunpack.c.l.b16 %v118
    %v322 = vunpack.c.l.b16 %v119
    %v323 = vunpack.c.l.b16 %v120
    %v324 = vunpack.c.l.b16 %v121
    %v325 = vunpack.c.l.b16 %v122
    %v326 = vunpack.c.l.b16 %v123
    %v327 = vunpack.c.l.b16 %v124
    %v328 = vunpack.c.l.b16 %v125
    %v329 = vunpack.c.l.b16 %v126
    %v330 = vunpack.c.l.b16 %v127
    %v331 = vunpack.c.l.b16 %v128
    %v332 = vunpack.c.l.b16 %v129
    %v333 = vunpack.c.l.b16 %v130
    %v334 = vunpack.c.l.b16 %v131
    %v335 = vunpack.c.l.b16 %v132
    %v336 = vunpack.c.l.b16 %v133
    %v337 = vunpack.c.l.b16 %v134
    %v338 = vunpack.c.l.b16 %v135
    %v339 = vunpack.c.l.b16 %v136
    %v340 = vunpack.c.l.b16 %v137
    %v341 = vunpack.c.l.b16 %v138
    %v342 = vunpack.c.l.b16 %v139
    %v343 = vunpack.c.l.b16 %v140
    %v344 = vunpack.c.l.b16 %v141
    %v345 = vunpack.c.l.b16 %v142
    %v346 = vunpack.c.l.b16 %v143
    %v347 = vunpack.c.l.b16 %v144
    %v348 = vunpack.c.l.b16 %v145
    %v349 = vunpack.c.l.b16 %v146
    %v350 = vunpack.c.l.b16 %v147
    %v351 = vunpack.c.l.b16 %v148
    %v352 = vunpack.c.l.b16 %v149
    %v353 = vunpack.c.l.b16 %v150
    %v354 = vunpack.c.l.b16 %v151
    %v355 = vunpack.c.l.b16 %v152
    %v356 = vunpack.c.l.b16 %v153
    %v357 = vunpack.c.l.b16 %v154
    %v358 = vunpack.c.l.b16 %v155
    %v359 = vunpack.c.l.b16 %v156
    %v360 = vunpack.c.l.b16 %v157
    %v361 = vunpack.c.l.b16 %v158
    %v362 = vunpack.c.l.b16 %v159
    %v363 = vunpack.c.l.b16 %v160
    %v364 = vunpack.c.l.b16 %v161
    %v365 = vunpack.c.l.b16 %v162
    %v366 = vunpack.c.l.b16 %v163
    %v367 = vunpack.c.l.b16 %v164
    %v368 = vunpack.c.l.b16 %v165
    %v369 = vunpack.c.l.b16 %v166
    %v370 = vunpack.c.l.b16 %v167
    %v371 = vunpack.c.l.b16 %v168
    %v372 = vunpack.c.l.b16 %v169
    %v373 = vunpack.c.l.b16 %v170
    %v374 = vunpack.c.l.b16 %v171
    %v375 = vunpack.c.l.b16 %v172
    %v376 = vunpack.c.l.b16 %v173
    %v377 = vunpack.c.l.b16 %v174
    %v378 = vunpack.c.l.b16 %v175
    %v379 = vunpack.c.l.b16 %v176
    %v380 = vunpack.c.l.b16 %v177
    %v381 = vunpack.c.l.b16 %v178
    %v382 = vunpack.c.l.b16 %v179
    %v383 = vunpack.c.l.b16 %v180
    %v384 = vunpack.c.l.b16 %v181
    %v385 = vunpack.c.l.b16 %v182
    %v386 = vunpack.c.l.b16 %v183
    %v387 = vunpack.c.l.b16 %v184
    %v388 = vunpack.c.l.b16 %v185
    %v389 = vunpack.c.l.b16 %v186
    %v390 = vunpack.c.l.b16 %v187
    %v391 = vunpack.c.l.b16 %v188
    %v392 = vunpack.c.l.b16 %v189
    %v393 = vunpack.c.l.b16 %v190
    %v394 = vunpack.c.l.b16 %v191
    %v395 = vunpack.c.l.b16 %v192
    %v396 = vunpack.c.l.b16 %v193
    %v397 = vunpack.c.l.b16 %v194
    %v398 = vunpack.c.l.b16 %v195
    %v399 = vpack.c.b16 %v302, %v301
    %v400 = vpack.c.b16 %v304, %v303
    %v401 = vpack.c.b16 %v306, %v305
    %v402 = vpack.c.b16 %v308, %v307
    %v403 = vpack.c.b16 %v310, %v309
    %v404 = vpack.c.b16 %v312, %v311
    %v405 = vpack.c.b16 %v314, %v313
    %v406 = vpack.c.b16 %v316, %v315
    %v407 = vpack.c.b16 %v318, %v317
    %v408 = vpack.c.b16 %v320, %v319
    %v409 = vpack.c.b16 %v322, %v321
    %v410 = vpack.c.b16 %v324, %v323
    %v411 = vpack.c.b16 %v326, %v325
    %v412 = vpack.c.b16 %v328, %v327
    %v413 = vpack.c.b16 %v330, %v329
    %v414 = vpack.c.b16 %v332, %v331
    %v415 = vpack.c.b16 %v334, %v333
    %v416 = vpack.c.b16 %v336, %v335
    %v417 = vpack.c.b16 %v338, %v337
    %v418 = vpack.c.b16 %v340, %v339
    %v419 = vpack.c.b16 %v342, %v341
    %v420 = vpack.c.b16 %v344, %v343
    %v421 = vpack.c.b16 %v346, %v345
    %v422 = vpack.c.b16 %v348, %v347
    %v423 = vpack.c.b16 %v350, %v349
    %v424 = vpack.c.b16 %v352, %v351
    %v425 = vpack.c.b16 %v354, %v353
    %v426 = vpack.c.b16 %v356, %v355
    %v427 = vpack.c.b16 %v358, %v357
    %v428 = vpack.c.b16 %v360, %v359
    %v429 = vpack.c.b16 %v362, %v361
    %v430 = vpack.c.b16 %v364, %v363
    %v431 = vpack.c.b16 %v366, %v365
    %v432 = vpack.c.b16 %v368, %v367
    %v433 = vpack.c.b16 %v370, %v369
    %v434 = vpack.c.b16 %v372, %v371
    %v435 = vpack.c.b16 %v374, %v373
    %v436 = vpack.c.b16 %v376, %v375
    %v437 = vpack.c.b16 %v378, %v377
    %v438 = vpack.c.b16 %v380, %v379
    %v439 = vpack.c.b16 %v382, %v381
    %v440 = vpack.c.b16 %v384, %v383
    %v441 = vpack.c.b16 %v386, %v385
    %v442 = vpack.c.b16 %v388, %v387
    %v443 = vpack.c.b16 %v390, %v389
    %v444 = vpack.c.b16 %v392, %v391
    %v445 = vpack.c.b16 %v394, %v393
    %v446 = vpack.c.b16 %v396, %v395
    %v447 = vpack.c.b16 %v398, %v397
    %vm497 = vcmask 130048
    %v499 = vsel %vm497, %v97, 0
    %501 = vmatprep.subr.bf16.mxu0 0
    %502 = vmatpush1.bf16.msra.mxu0 %v399
    %503 = vmatprep.subr.bf16.mxu0 0
    %504 = vmatpush1.bf16.msra.mxu0 %v400
    %505 = vmatprep.subr.bf16.mxu0 0
    %506 = vmatpush1.bf16.msra.mxu0 %v401
    %507 = vmatprep.subr.bf16.mxu0 0
    %508 = vmatpush1.bf16.msra.mxu0 %v402
    %509 = vmatprep.subr.bf16.mxu0 0
    %510 = vmatpush1.bf16.msra.mxu0 %v403
    %511 = vmatprep.subr.bf16.mxu0 0
    %512 = vmatpush1.bf16.msra.mxu0 %v404
    %513 = vmatprep.subr.bf16.mxu0 0
    %514 = vmatpush1.bf16.msra.mxu0 %v405
    %515 = vmatprep.subr.bf16.mxu0 0
    %516 = vmatpush1.bf16.msra.mxu0 %v406
    %517 = vmatprep.subr.bf16.mxu0 0
    %518 = vmatpush1.bf16.msra.mxu0 %v407
    %519 = vmatprep.subr.bf16.mxu0 0
    %520 = vmatpush1.bf16.msra.mxu0 %v408
    %521 = vmatprep.subr.bf16.mxu0 0
    %522 = vmatpush1.bf16.msra.mxu0 %v409
    %523 = vmatprep.subr.bf16.mxu0 0
    %524 = vmatpush1.bf16.msra.mxu0 %v410
    %525 = vmatprep.subr.bf16.mxu0 0
    %526 = vmatpush1.bf16.msra.mxu0 %v411
    %527 = vmatprep.subr.bf16.mxu0 0
    %528 = vmatpush1.bf16.msra.mxu0 %v412
    %529 = vmatprep.subr.bf16.mxu0 0
    %530 = vmatpush1.bf16.msra.mxu0 %v413
    %531 = vmatprep.subr.bf16.mxu0 0
    %532 = vmatpush1.bf16.msra.mxu0 %v414
    %533 = vmatprep.mubr.bf16.mxu0 %v92
    %534 = vmatmul.mubr.bf16.gmra.mrb[0].mxu0 %v91
    %v535 = vpop.f32.mrb[0].mxu0
    %v536 = vadd.f32 %v201, %v535
    %v537 = vpop.f32.mrb[0].mxu0
    %v538 = vpop.f32.mrb[0].mxu0
    %v539 = vpop.f32.mrb[0].mxu0
    %540 = vdwg.mxu0
    %541 = vmatprep.subr.bf16.mxu0 0
    %542 = vmatpush1.bf16.msra.mxu0 %v415
    %543 = vmatprep.subr.bf16.mxu0 0
    %544 = vmatpush1.bf16.msra.mxu0 %v416
    %545 = vmatprep.subr.bf16.mxu0 0
    %546 = vmatpush1.bf16.msra.mxu0 %v417
    %547 = vmatprep.subr.bf16.mxu0 0
    %548 = vmatpush1.bf16.msra.mxu0 %v418
    %549 = vmatprep.subr.bf16.mxu0 0
    %550 = vmatpush1.bf16.msra.mxu0 %v419
    %551 = vmatprep.subr.bf16.mxu0 0
    %552 = vmatpush1.bf16.msra.mxu0 %v420
    %553 = vmatprep.subr.bf16.mxu0 0
    %554 = vmatpush1.bf16.msra.mxu0 %v421
    %555 = vmatprep.subr.bf16.mxu0 0
    %556 = vmatpush1.bf16.msra.mxu0 %v422
    %557 = vmatprep.subr.bf16.mxu0 0
    %558 = vmatpush1.bf16.msra.mxu0 %v423
    %559 = vmatprep.subr.bf16.mxu0 0
    %560 = vmatpush1.bf16.msra.mxu0 %v424
    %561 = vmatprep.subr.bf16.mxu0 0
    %562 = vmatpush1.bf16.msra.mxu0 %v425
    %563 = vmatprep.subr.bf16.mxu0 0
    %564 = vmatpush1.bf16.msra.mxu0 %v426
    %565 = vmatprep.subr.bf16.mxu0 0
    %566 = vmatpush1.bf16.msra.mxu0 %v427
    %567 = vmatprep.subr.bf16.mxu0 0
    %568 = vmatpush1.bf16.msra.mxu0 %v428
    %569 = vmatprep.subr.bf16.mxu0 0
    %570 = vmatpush1.bf16.msra.mxu0 %v429
    %571 = vmatprep.subr.bf16.mxu0 0
    %572 = vmatpush1.bf16.msra.mxu0 %v430
    %573 = vmatprep.mubr.bf16.mxu0 %v94
    %574 = vmatmul.mubr.bf16.gmra.mrb[0].mxu0 %v93
    %v575 = vpop.f32.mrb[0].mxu0
    %v576 = vadd.f32 %v536, %v575
    %v577 = vpop.f32.mrb[0].mxu0
    %v578 = vpop.f32.mrb[0].mxu0
    %v579 = vpop.f32.mrb[0].mxu0
    %580 = vdwg.mxu0
    %581 = vmatprep.subr.bf16.mxu0 0
    %582 = vmatpush1.bf16.msra.mxu0 %v431
    %583 = vmatprep.subr.bf16.mxu0 0
    %584 = vmatpush1.bf16.msra.mxu0 %v432
    %585 = vmatprep.subr.bf16.mxu0 0
    %586 = vmatpush1.bf16.msra.mxu0 %v433
    %587 = vmatprep.subr.bf16.mxu0 0
    %588 = vmatpush1.bf16.msra.mxu0 %v434
    %589 = vmatprep.subr.bf16.mxu0 0
    %590 = vmatpush1.bf16.msra.mxu0 %v435
    %591 = vmatprep.subr.bf16.mxu0 0
    %592 = vmatpush1.bf16.msra.mxu0 %v436
    %593 = vmatprep.subr.bf16.mxu0 0
    %594 = vmatpush1.bf16.msra.mxu0 %v437
    %595 = vmatprep.subr.bf16.mxu0 0
    %596 = vmatpush1.bf16.msra.mxu0 %v438
    %597 = vmatprep.subr.bf16.mxu0 0
    %598 = vmatpush1.bf16.msra.mxu0 %v439
    %599 = vmatprep.subr.bf16.mxu0 0
    %600 = vmatpush1.bf16.msra.mxu0 %v440
    %601 = vmatprep.subr.bf16.mxu0 0
    %602 = vmatpush1.bf16.msra.mxu0 %v441
    %603 = vmatprep.subr.bf16.mxu0 0
    %604 = vmatpush1.bf16.msra.mxu0 %v442
    %605 = vmatprep.subr.bf16.mxu0 0
    %606 = vmatpush1.bf16.msra.mxu0 %v443
    %607 = vmatprep.subr.bf16.mxu0 0
    %608 = vmatpush1.bf16.msra.mxu0 %v444
    %609 = vmatprep.subr.bf16.mxu0 0
    %610 = vmatpush1.bf16.msra.mxu0 %v445
    %611 = vmatprep.subr.bf16.mxu0 0
    %612 = vmatpush1.bf16.msra.mxu0 %v446
    %613 = vmatprep.mubr.bf16.mxu0 %v96
    %614 = vmatmul.mubr.bf16.gmra.mrb[0].mxu0 %v95
    %v615 = vpop.f32.mrb[0].mxu0
    %v616 = vadd.f32 %v576, %v615
    %v617 = vpop.f32.mrb[0].mxu0
    %v618 = vpop.f32.mrb[0].mxu0
    %v619 = vpop.f32.mrb[0].mxu0
    %620 = vdwg.mxu0
    %621 = vmatprep.subr.bf16.mxu0 0
    %622 = vmatpush1.bf16.msra.mxu0 %v447
    %623 = vmatprep.subr.bf16.mxu0 0
    %624 = vmatpush1.bf16.msra.mxu0 0
    %625 = vmatprep.subr.bf16.mxu0 0
    %626 = vmatpush1.bf16.msra.mxu0 0
    %627 = vmatprep.subr.bf16.mxu0 0
    %628 = vmatpush1.bf16.msra.mxu0 0
    %629 = vmatprep.subr.bf16.mxu0 0
    %630 = vmatpush1.bf16.msra.mxu0 0
    %631 = vmatprep.subr.bf16.mxu0 0
    %632 = vmatpush1.bf16.msra.mxu0 0
    %633 = vmatprep.subr.bf16.mxu0 0
    %634 = vmatpush1.bf16.msra.mxu0 0
    %635 = vmatprep.subr.bf16.mxu0 0
    %636 = vmatpush1.bf16.msra.mxu0 0
    %637 = vmatprep.subr.bf16.mxu0 0
    %638 = vmatpush1.bf16.msra.mxu0 0
    %639 = vmatprep.subr.bf16.mxu0 0
    %640 = vmatpush1.bf16.msra.mxu0 0
    %641 = vmatprep.subr.bf16.mxu0 0
    %642 = vmatpush1.bf16.msra.mxu0 0
    %643 = vmatprep.subr.bf16.mxu0 0
    %644 = vmatpush1.bf16.msra.mxu0 0
    %645 = vmatprep.subr.bf16.mxu0 0
    %646 = vmatpush1.bf16.msra.mxu0 0
    %647 = vmatprep.subr.bf16.mxu0 0
    %648 = vmatpush1.bf16.msra.mxu0 0
    %649 = vmatprep.subr.bf16.mxu0 0
    %650 = vmatpush1.bf16.msra.mxu0 0
    %651 = vmatprep.subr.bf16.mxu0 0
    %652 = vmatpush1.bf16.msra.mxu0 0
    %653 = vmatprep.mubr.bf16.mxu0 0
    %654 = vmatmul.mubr.bf16.gmra.mrb[0].mxu0 %v499
    %v655 = vpop.f32.mrb[0].mxu0
    %v656 = vadd.f32 %v616, %v655
    %v657 = vpop.f32.mrb[0].mxu0
    %v658 = vpop.f32.mrb[0].mxu0
    %v659 = vpop.f32.mrb[0].mxu0
    %660 = vdwg.mxu0
    %v661 = vld [vmem:[%s2] sm:$0xf]
    %v662 = vld [vmem:[%s2 + $0x4] sm:$0xf]
    %v663 = vld [vmem:[%s2 + $0x8] sm:$0xf]
    %v664 = vld [vmem:[%s2 + $0xc] sm:$0xf]
    %v665 = vld [vmem:[%s2 + $0x10] sm:$0xf]
    %v666 = vld [vmem:[%s2 + $0x14] sm:$0xf]
    %v667 = vld [vmem:[%s2 + $0x18] sm:$0xf]
    %v668 = vld [vmem:[%s2 + $0x1c] sm:$0xf]
    %v669 = vld [vmem:[%s2 + $0x20] sm:$0xf]
    %v670 = vld [vmem:[%s2 + $0x24] sm:$0xf]
    %v671 = vld [vmem:[%s2 + $0x28] sm:$0xf]
    %v672 = vld [vmem:[%s2 + $0x2c] sm:$0xf]
    %v673 = vld [vmem:[%s2 + $0x30] sm:$0xf]
    %v674 = vld [vmem:[%s2 + $0x34] sm:$0xf]
    %v675 = vld [vmem:[%s2 + $0x38] sm:$0xf]
    %v676 = vld [vmem:[%s2 + $0x3c] sm:$0xf]
    %v677 = vlaneseq
    %v678 = vand.u32 %v677, 127
    %vm679 = vcmp.lt.s32.totalorder %v678, 100
    %v680 = vsel %vm679, 1, 0
    %v681 = vcvt.s32.f32 %v680
    %v682 = vtanh.pop %v656
    %vm683 = vcmask 1041408
    %v684 = vsel %vm683, %v682, 0.0
    %685 = vadd.xlane.f32.xlu0 %v684
    %v686 = vpop.xlane.xlu0 %685
    %v687 = vrot.slane %v686, 4
    %v688 = vadd.f32 %v686, %v687
    %v689 = vrot.slane %v688, 2
    %v690 = vadd.f32 %v688, %v689
    %v691 = vrot.slane %v690, 1
    %v692 = vadd.f32 %v690, %v691
    %s693 = vtos %v692
    %v694 = vmul.f32 %v682, %v682
    %v695 = vsel %vm683, %v694, 0.0
    %696 = vadd.xlane.f32.xlu0 %v695
    %v697 = vpop.xlane.xlu0 %696
    %v698 = vrot.slane %v697, 4
    %v699 = vadd.f32 %v697, %v698
    %v700 = vrot.slane %v699, 2
    %v701 = vadd.f32 %v699, %v700
    %v702 = vrot.slane %v701, 1
    %v703 = vadd.f32 %v701, %v702
    %s704 = vtos %v703
    %v705 = vrcp.pop 200.0
    %s706 = vtos %v705
    %s707 = smul.f32 %s693, %s706
    %s708 = smul.f32 %s693, %s707
    %s709 = ssub.f32 %s704, %s708
    %v710 = vrcp.pop 199.0
    %s711 = vtos %v710
    %s712 = smul.f32 %s709, %s711
    %v713 = vstv %s712
    %v714 = vrsqrt.pop %v713
    %v715 = vmul.f32 %v713, %v714
    %vm716 = vcmp.eq.f32.partialorder %v713, inf
    %v717 = vsel %vm716, %v713, %v715
    %vm718 = vcmp.eq.f32.partialorder %v713, 0.0
    %v719 = vand.u32 %v713, 2147483648
    %v720 = vsel %vm718, %v719, %v717
    %s721 = vtos %v720
    %v722 = vstv %s707
    %v723 = vsub.f32 %v682, %v722
    %v724 = vmul.f32 %v723, %v723
    %v725 = vstv %s712
    %v726 = vrcp.pop %v725
    %s727 = vtos %v726
    %s728 = smul.f32 -0.5, %s727
    %v729 = vstv %s728
    %v730 = vmul.f32 %v724, %v729
    %v731 = vmul.f32 %v730, 1.442695
    %v732 = vpow.pop %v731
    %v733 = vmul.f32 %v732, %v681
    %v734 = vsel %vm683, %v733, 0.0
    %735 = vadd.xlane.f32.xlu0 %v734
    %v736 = vpop.xlane.xlu0 %735
    %v737 = vrot.slane %v736, 4
    %v738 = vadd.f32 %v736, %v737
    %v739 = vrot.slane %v738, 2
    %v740 = vadd.f32 %v738, %v739
    %v741 = vrot.slane %v740, 1
    %v742 = vadd.f32 %v740, %v741
    %s743 = vtos %v742
    %v744 = vstv %s712
    %v745 = vlog2.pop %v744
    %v746 = vmul.f32 %v745, 0.6931472
    %s747 = vtos %v746
    %s748 = smul.f32 %s747, 0.5
    %s749 = sadd.f32 %s748, 0.9189385
    %v750 = vstv %s743
    %v751 = vlog2.pop %v750
    %v752 = vmul.f32 %v751, 0.6931472
    %s753 = vtos %v752
    %s754 = ssub.f32 %s753, %s749
    %s755 = smax.f32 %s754, 0.0
    %s756 = ssub.f32 %s754, %s755
    %v757 = vstv %s756
    %v758 = vmul.f32 %v757, 1.442695
    %v759 = vpow.pop %v758
    %s760 = vtos %v759
    %s761 = ssub.f32 0.0, %s755
    %v762 = vstv %s761
    %v763 = vmul.f32 %v762, 1.442695
    %v764 = vpow.pop %v763
    %s765 = vtos %v764
    %s766 = sadd.f32 %s760, %s765
    %v767 = vstv %s766
    %v768 = vlog2.pop %v767
    %v769 = vmul.f32 %v768, 0.6931472
    %s770 = vtos %v769
    %s771 = sadd.f32 %s755, %s770
    %s772 = ssub.f32 %s771, %s754
    %v773 = vstv %s772
    %v774 = vmul.f32 %v773, %v682
    %s775 = scalar_lea.smem [#allocation7], 0
    %776 = sst [smem:[%s775]] %s707
    %s777 = scalar_lea.smem [#allocation8], 0
    %778 = sst [smem:[%s777]] %s721
    %s779 = scalar_lea.smem [#allocation10], 0
    %780 = sst [smem:[%s779]] %s771
    %s781 = scalar_lea.smem [#allocation11], 0
    %782 = sst [smem:[%s781]] %s772
    %v783 = vpack.c.bf16 %v774, %v774
    %v800 = vunpack.c.l.b16 %v661
    %v801 = vunpack.c.l.b16 %v662
    %v802 = vunpack.c.l.b16 %v663
    %v803 = vunpack.c.l.b16 %v664
    %v804 = vunpack.c.l.b16 %v665
    %v805 = vunpack.c.l.b16 %v666
    %v806 = vunpack.c.l.b16 %v667
    %v807 = vunpack.c.l.b16 %v668
    %v808 = vunpack.c.l.b16 %v669
    %v809 = vunpack.c.l.b16 %v670
    %v810 = vunpack.c.l.b16 %v671
    %v811 = vunpack.c.l.b16 %v672
    %v812 = vunpack.c.l.b16 %v673
    %v813 = vunpack.c.l.b16 %v674
    %v814 = vunpack.c.l.b16 %v675
    %v815 = vunpack.c.l.b16 %v676
    %v816 = vpack.c.b16 %v801, %v800
    %v817 = vpack.c.b16 %v803, %v802
    %v818 = vpack.c.b16 %v805, %v804
    %v819 = vpack.c.b16 %v807, %v806
    %v820 = vpack.c.b16 %v809, %v808
    %v821 = vpack.c.b16 %v811, %v810
    %v822 = vpack.c.b16 %v813, %v812
    %v823 = vpack.c.b16 %v815, %v814
    %832 = vmatprep.subr.bf16.mxu0 0
    %833 = vmatpush1.bf16.msra.mxu0 %v816
    %834 = vmatprep.subr.bf16.mxu0 0
    %835 = vmatpush1.bf16.msra.mxu0 %v817
    %836 = vmatprep.subr.bf16.mxu0 0
    %837 = vmatpush1.bf16.msra.mxu0 %v818
    %838 = vmatprep.subr.bf16.mxu0 0
    %839 = vmatpush1.bf16.msra.mxu0 %v819
    %840 = vmatprep.subr.bf16.mxu0 0
    %841 = vmatpush1.bf16.msra.mxu0 %v820
    %842 = vmatprep.subr.bf16.mxu0 0
    %843 = vmatpush1.bf16.msra.mxu0 %v821
    %844 = vmatprep.subr.bf16.mxu0 0
    %845 = vmatpush1.bf16.msra.mxu0 %v822
    %846 = vmatprep.subr.bf16.mxu0 0
    %847 = vmatpush1.bf16.msra.mxu0 %v823
    %848 = vmatprep.subr.bf16.mxu0 0
    %849 = vmatpush1.bf16.msra.mxu0 0
    %850 = vmatprep.subr.bf16.mxu0 0
    %851 = vmatpush1.bf16.msra.mxu0 0
    %852 = vmatprep.subr.bf16.mxu0 0
    %853 = vmatpush1.bf16.msra.mxu0 0
    %854 = vmatprep.subr.bf16.mxu0 0
    %855 = vmatpush1.bf16.msra.mxu0 0
    %856 = vmatprep.subr.bf16.mxu0 0
    %857 = vmatpush1.bf16.msra.mxu0 0
    %858 = vmatprep.subr.bf16.mxu0 0
    %859 = vmatpush1.bf16.msra.mxu0 0
    %860 = vmatprep.subr.bf16.mxu0 0
    %861 = vmatpush1.bf16.msra.mxu0 0
    %862 = vmatprep.subr.bf16.mxu0 0
    %863 = vmatpush1.bf16.msra.mxu0 0
    %864 = vmatprep.mubr.bf16.mxu0 0
    %865 = vmatmul.mubr.bf16.gmra.mrb[0].mxu0 %v783
    %v866 = vpop.f32.mrb[0].mxu0
    %v867 = vadd.f32 0.0, %v866
    %v868 = vpop.f32.mrb[0].mxu0
    %v869 = vpop.f32.mrb[0].mxu0
    %v870 = vpop.f32.mrb[0].mxu0
    %871 = vdwg.mxu0
    %v872 = vadd.f32 %v656, %v867
    %v873 = vtanh.pop %v872
    %v874 = vsel %vm683, %v873, 0.0
    %875 = vadd.xlane.f32.xlu0 %v874
    %v876 = vpop.xlane.xlu0 %875
    %v877 = vrot.slane %v876, 4
    %v878 = vadd.f32 %v876, %v877
    %v879 = vrot.slane %v878, 2
    %v880 = vadd.f32 %v878, %v879
    %v881 = vrot.slane %v880, 1
    %v882 = vadd.f32 %v880, %v881
    %s883 = vtos %v882
    %v884 = vmul.f32 %v873, %v873
    %v885 = vsel %vm683, %v884, 0.0
    %886 = vadd.xlane.f32.xlu0 %v885
    %v887 = vpop.xlane.xlu0 %886
    %v888 = vrot.slane %v887, 4
    %v889 = vadd.f32 %v887, %v888
    %v890 = vrot.slane %v889, 2
    %v891 = vadd.f32 %v889, %v890
    %v892 = vrot.slane %v891, 1
    %v893 = vadd.f32 %v891, %v892
    %s894 = vtos %v893
    %v895 = vrcp.pop 200.0
    %s896 = vtos %v895
    %s897 = smul.f32 %s883, %s896
    %s898 = smul.f32 %s883, %s897
    %s899 = ssub.f32 %s894, %s898
    %v900 = vrcp.pop 199.0
    %s901 = vtos %v900
    %s902 = smul.f32 %s899, %s901
    %v903 = vstv %s902
    %v904 = vrsqrt.pop %v903
    %v905 = vmul.f32 %v903, %v904
    %vm906 = vcmp.eq.f32.partialorder %v903, inf
    %v907 = vsel %vm906, %v903, %v905
    %vm908 = vcmp.eq.f32.partialorder %v903, 0.0
    %v909 = vand.u32 %v903, 2147483648
    %v910 = vsel %vm908, %v909, %v907
    %s911 = vtos %v910
    %v912 = vstv %s897
    %v913 = vsub.f32 %v873, %v912
    %v914 = vmul.f32 %v913, %v913
    %v915 = vstv %s902
    %v916 = vrcp.pop %v915
    %s917 = vtos %v916
    %s918 = smul.f32 -0.5, %s917
    %v919 = vstv %s918
    %v920 = vmul.f32 %v914, %v919
    %v921 = vmul.f32 %v920, 1.442695
    %v922 = vpow.pop %v921
    %v923 = vmul.f32 %v922, %v681
    %v924 = vsel %vm683, %v923, 0.0
    %925 = vadd.xlane.f32.xlu0 %v924
    %v926 = vpop.xlane.xlu0 %925
    %v927 = vrot.slane %v926, 4
    %v928 = vadd.f32 %v926, %v927
    %v929 = vrot.slane %v928, 2
    %v930 = vadd.f32 %v928, %v929
    %v931 = vrot.slane %v930, 1
    %v932 = vadd.f32 %v930, %v931
    %s933 = vtos %v932
    %v934 = vstv %s902
    %v935 = vlog2.pop %v934
    %v936 = vmul.f32 %v935, 0.6931472
    %s937 = vtos %v936
    %s938 = smul.f32 %s937, 0.5
    %s939 = sadd.f32 %s938, 0.9189385
    %v940 = vstv %s933
    %v941 = vlog2.pop %v940
    %v942 = vmul.f32 %v941, 0.6931472
    %s943 = vtos %v942
    %s944 = ssub.f32 %s943, %s939
    %s945 = smax.f32 %s944, 0.0
    %s946 = ssub.f32 %s944, %s945
    %v947 = vstv %s946
    %v948 = vmul.f32 %v947, 1.442695
    %v949 = vpow.pop %v948
    %s950 = vtos %v949
    %s951 = ssub.f32 0.0, %s945
    %v952 = vstv %s951
    %v953 = vmul.f32 %v952, 1.442695
    %v954 = vpow.pop %v953
    %s955 = vtos %v954
    %s956 = sadd.f32 %s950, %s955
    %v957 = vstv %s956
    %v958 = vlog2.pop %v957
    %v959 = vmul.f32 %v958, 0.6931472
    %s960 = vtos %v959
    %s961 = sadd.f32 %s945, %s960
    %s962 = ssub.f32 %s961, %s944
    %v963 = vstv %s962
    %v964 = vmul.f32 %v963, %v873
    %s965 = scalar_lea.smem [#allocation7], 1
    %966 = sst [smem:[%s965]] %s897
    %s967 = scalar_lea.smem [#allocation8], 1
    %968 = sst [smem:[%s967]] %s911
    %s969 = scalar_lea.smem [#allocation10], 1
    %970 = sst [smem:[%s969]] %s961
    %s971 = scalar_lea.smem [#allocation11], 1
    %972 = sst [smem:[%s971]] %s962
    %v973 = vpack.c.bf16 %v964, %v964
    %974 = vmatprep.subr.bf16.mxu0 0
    %975 = vmatpush1.bf16.msra.mxu0 %v816
    %976 = vmatprep.subr.bf16.mxu0 0
    %977 = vmatpush1.bf16.msra.mxu0 %v817
    %978 = vmatprep.subr.bf16.mxu0 0
    %979 = vmatpush1.bf16.msra.mxu0 %v818
    %980 = vmatprep.subr.bf16.mxu0 0
    %981 = vmatpush1.bf16.msra.mxu0 %v819
    %982 = vmatprep.subr.bf16.mxu0 0
    %983 = vmatpush1.bf16.msra.mxu0 %v820
    %984 = vmatprep.subr.bf16.mxu0 0
    %985 = vmatpush1.bf16.msra.mxu0 %v821
    %986 = vmatprep.subr.bf16.mxu0 0
    %987 = vmatpush1.bf16.msra.mxu0 %v822
    %988 = vmatprep.subr.bf16.mxu0 0
    %989 = vmatpush1.bf16.msra.mxu0 %v823
    %990 = vmatprep.subr.bf16.mxu0 0
    %991 = vmatpush1.bf16.msra.mxu0 0
    %992 = vmatprep.subr.bf16.mxu0 0
    %993 = vmatpush1.bf16.msra.mxu0 0
    %994 = vmatprep.subr.bf16.mxu0 0
    %995 = vmatpush1.bf16.msra.mxu0 0
    %996 = vmatprep.subr.bf16.mxu0 0
    %997 = vmatpush1.bf16.msra.mxu0 0
    %998 = vmatprep.subr.bf16.mxu0 0
    %999 = vmatpush1.bf16.msra.mxu0 0
    %1000 = vmatprep.subr.bf16.mxu0 0
    %1001 = vmatpush1.bf16.msra.mxu0 0
    %1002 = vmatprep.subr.bf16.mxu0 0
    %1003 = vmatpush1.bf16.msra.mxu0 0
    %1004 = vmatprep.subr.bf16.mxu0 0
    %1005 = vmatpush1.bf16.msra.mxu0 0
    %1006 = vmatprep.mubr.bf16.mxu0 0
    %1007 = vmatmul.mubr.bf16.gmra.mrb[0].mxu0 %v973
    %v1008 = vpop.f32.mrb[0].mxu0
    %v1009 = vadd.f32 0.0, %v1008
    %v1010 = vpop.f32.mrb[0].mxu0
    %v1011 = vpop.f32.mrb[0].mxu0
    %v1012 = vpop.f32.mrb[0].mxu0
    %1013 = vdwg.mxu0
    %v1014 = vadd.f32 %v656, %v1009
    %v1015 = vtanh.pop %v1014
    %v1016 = vsel %vm683, %v1015, 0.0
    %1017 = vadd.xlane.f32.xlu0 %v1016
    %v1018 = vpop.xlane.xlu0 %1017
    %v1019 = vrot.slane %v1018, 4
    %v1020 = vadd.f32 %v1018, %v1019
    %v1021 = vrot.slane %v1020, 2
    %v1022 = vadd.f32 %v1020, %v1021
    %v1023 = vrot.slane %v1022, 1
    %v1024 = vadd.f32 %v1022, %v1023
    %s1025 = vtos %v1024
    %v1026 = vmul.f32 %v1015, %v1015
    %v1027 = vsel %vm683, %v1026, 0.0
    %1028 = vadd.xlane.f32.xlu0 %v1027
    %v1029 = vpop.xlane.xlu0 %1028
    %v1030 = vrot.slane %v1029, 4
    %v1031 = vadd.f32 %v1029, %v1030
    %v1032 = vrot.slane %v1031, 2
    %v1033 = vadd.f32 %v1031, %v1032
    %v1034 = vrot.slane %v1033, 1
    %v1035 = vadd.f32 %v1033, %v1034
    %s1036 = vtos %v1035
    %v1037 = vrcp.pop 200.0
    %s1038 = vtos %v1037
    %s1039 = smul.f32 %s1025, %s1038
    %s1040 = smul.f32 %s1025, %s1039
    %s1041 = ssub.f32 %s1036, %s1040
    %v1042 = vrcp.pop 199.0
    %s1043 = vtos %v1042
    %s1044 = smul.f32 %s1041, %s1043
    %v1045 = vstv %s1044
    %v1046 = vrsqrt.pop %v1045
    %v1047 = vmul.f32 %v1045, %v1046
    %vm1048 = vcmp.eq.f32.partialorder %v1045, inf
    %v1049 = vsel %vm1048, %v1045, %v1047
    %vm1050 = vcmp.eq.f32.partialorder %v1045, 0.0
    %v1051 = vand.u32 %v1045, 2147483648
    %v1052 = vsel %vm1050, %v1051, %v1049
    %s1053 = vtos %v1052
    %v1054 = vstv %s1039
    %v1055 = vsub.f32 %v1015, %v1054
    %v1056 = vmul.f32 %v1055, %v1055
    %v1057 = vstv %s1044
    %v1058 = vrcp.pop %v1057
    %s1059 = vtos %v1058
    %s1060 = smul.f32 -0.5, %s1059
    %v1061 = vstv %s1060
    %v1062 = vmul.f32 %v1056, %v1061
    %v1063 = vmul.f32 %v1062, 1.442695
    %v1064 = vpow.pop %v1063
    %v1065 = vmul.f32 %v1064, %v681
    %v1066 = vsel %vm683, %v1065, 0.0
    %1067 = vadd.xlane.f32.xlu0 %v1066
    %v1068 = vpop.xlane.xlu0 %1067
    %v1069 = vrot.slane %v1068, 4
    %v1070 = vadd.f32 %v1068, %v1069
    %v1071 = vrot.slane %v1070, 2
    %v1072 = vadd.f32 %v1070, %v1071
    %v1073 = vrot.slane %v1072, 1
    %v1074 = vadd.f32 %v1072, %v1073
    %s1075 = vtos %v1074
    %v1076 = vstv %s1044
    %v1077 = vlog2.pop %v1076
    %v1078 = vmul.f32 %v1077, 0.6931472
    %s1079 = vtos %v1078
    %s1080 = smul.f32 %s1079, 0.5
    %s1081 = sadd.f32 %s1080, 0.9189385
    %v1082 = vstv %s1075
    %v1083 = vlog2.pop %v1082
    %v1084 = vmul.f32 %v1083, 0.6931472
    %s1085 = vtos %v1084
    %s1086 = ssub.f32 %s1085, %s1081
    %s1087 = smax.f32 %s1086, 0.0
    %s1088 = ssub.f32 %s1086, %s1087
    %v1089 = vstv %s1088
    %v1090 = vmul.f32 %v1089, 1.442695
    %v1091 = vpow.pop %v1090
    %s1092 = vtos %v1091
    %s1093 = ssub.f32 0.0, %s1087
    %v1094 = vstv %s1093
    %v1095 = vmul.f32 %v1094, 1.442695
    %v1096 = vpow.pop %v1095
    %s1097 = vtos %v1096
    %s1098 = sadd.f32 %s1092, %s1097
    %v1099 = vstv %s1098
    %v1100 = vlog2.pop %v1099
    %v1101 = vmul.f32 %v1100, 0.6931472
    %s1102 = vtos %v1101
    %s1103 = sadd.f32 %s1087, %s1102
    %s1104 = ssub.f32 %s1103, %s1086
    %v1105 = vstv %s1104
    %v1106 = vmul.f32 %v1105, %v1015
    %s1107 = scalar_lea.smem [#allocation7], 2
    %1108 = sst [smem:[%s1107]] %s1039
    %s1109 = scalar_lea.smem [#allocation8], 2
    %1110 = sst [smem:[%s1109]] %s1053
    %s1111 = scalar_lea.smem [#allocation10], 2
    %1112 = sst [smem:[%s1111]] %s1103
    %s1113 = scalar_lea.smem [#allocation11], 2
    %1114 = sst [smem:[%s1113]] %s1104
    %v1115 = vpack.c.bf16 %v1106, %v1106
    %1116 = vmatprep.subr.bf16.mxu0 0
    %1117 = vmatpush1.bf16.msra.mxu0 %v816
    %1118 = vmatprep.subr.bf16.mxu0 0
    %1119 = vmatpush1.bf16.msra.mxu0 %v817
    %1120 = vmatprep.subr.bf16.mxu0 0
    %1121 = vmatpush1.bf16.msra.mxu0 %v818
    %1122 = vmatprep.subr.bf16.mxu0 0
    %1123 = vmatpush1.bf16.msra.mxu0 %v819
    %1124 = vmatprep.subr.bf16.mxu0 0
    %1125 = vmatpush1.bf16.msra.mxu0 %v820
    %1126 = vmatprep.subr.bf16.mxu0 0
    %1127 = vmatpush1.bf16.msra.mxu0 %v821
    %1128 = vmatprep.subr.bf16.mxu0 0
    %1129 = vmatpush1.bf16.msra.mxu0 %v822
    %1130 = vmatprep.subr.bf16.mxu0 0
    %1131 = vmatpush1.bf16.msra.mxu0 %v823
    %1132 = vmatprep.subr.bf16.mxu0 0
    %1133 = vmatpush1.bf16.msra.mxu0 0
    %1134 = vmatprep.subr.bf16.mxu0 0
    %1135 = vmatpush1.bf16.msra.mxu0 0
    %1136 = vmatprep.subr.bf16.mxu0 0
    %1137 = vmatpush1.bf16.msra.mxu0 0
    %1138 = vmatprep.subr.bf16.mxu0 0
    %1139 = vmatpush1.bf16.msra.mxu0 0
    %1140 = vmatprep.subr.bf16.mxu0 0
    %1141 = vmatpush1.bf16.msra.mxu0 0
    %1142 = vmatprep.subr.bf16.mxu0 0
    %1143 = vmatpush1.bf16.msra.mxu0 0
    %1144 = vmatprep.subr.bf16.mxu0 0
    %1145 = vmatpush1.bf16.msra.mxu0 0
    %1146 = vmatprep.subr.bf16.mxu0 0
    %1147 = vmatpush1.bf16.msra.mxu0 0
    %1148 = vmatprep.mubr.bf16.mxu0 0
    %1149 = vmatmul.mubr.bf16.gmra.mrb[0].mxu0 %v1115
    %v1150 = vpop.f32.mrb[0].mxu0
    %v1151 = vadd.f32 0.0, %v1150
    %v1152 = vpop.f32.mrb[0].mxu0
    %v1153 = vpop.f32.mrb[0].mxu0
    %v1154 = vpop.f32.mrb[0].mxu0
    %1155 = vdwg.mxu0
    %v1156 = vadd.f32 %v656, %v1151
    %v1157 = vtanh.pop %v1156
    %v1158 = vsel %vm683, %v1157, 0.0
    %1159 = vadd.xlane.f32.xlu0 %v1158
    %v1160 = vpop.xlane.xlu0 %1159
    %v1161 = vrot.slane %v1160, 4
    %v1162 = vadd.f32 %v1160, %v1161
    %v1163 = vrot.slane %v1162, 2
    %v1164 = vadd.f32 %v1162, %v1163
    %v1165 = vrot.slane %v1164, 1
    %v1166 = vadd.f32 %v1164, %v1165
    %s1167 = vtos %v1166
    %v1168 = vmul.f32 %v1157, %v1157
    %v1169 = vsel %vm683, %v1168, 0.0
    %1170 = vadd.xlane.f32.xlu0 %v1169
    %v1171 = vpop.xlane.xlu0 %1170
    %v1172 = vrot.slane %v1171, 4
    %v1173 = vadd.f32 %v1171, %v1172
    %v1174 = vrot.slane %v1173, 2
    %v1175 = vadd.f32 %v1173, %v1174
    %v1176 = vrot.slane %v1175, 1
    %v1177 = vadd.f32 %v1175, %v1176
    %s1178 = vtos %v1177
    %v1179 = vrcp.pop 200.0
    %s1180 = vtos %v1179
    %s1181 = smul.f32 %s1167, %s1180
    %s1182 = smul.f32 %s1167, %s1181
    %s1183 = ssub.f32 %s1178, %s1182
    %v1184 = vrcp.pop 199.0
    %s1185 = vtos %v1184
    %s1186 = smul.f32 %s1183, %s1185
    %v1187 = vstv %s1186
    %v1188 = vrsqrt.pop %v1187
    %v1189 = vmul.f32 %v1187, %v1188
    %vm1190 = vcmp.eq.f32.partialorder %v1187, inf
    %v1191 = vsel %vm1190, %v1187, %v1189
    %vm1192 = vcmp.eq.f32.partialorder %v1187, 0.0
    %v1193 = vand.u32 %v1187, 2147483648
    %v1194 = vsel %vm1192, %v1193, %v1191
    %s1195 = vtos %v1194
    %v1196 = vstv %s1181
    %v1197 = vsub.f32 %v1157, %v1196
    %v1198 = vmul.f32 %v1197, %v1197
    %v1199 = vstv %s1186
    %v1200 = vrcp.pop %v1199
    %s1201 = vtos %v1200
    %s1202 = smul.f32 -0.5, %s1201
    %v1203 = vstv %s1202
    %v1204 = vmul.f32 %v1198, %v1203
    %v1205 = vmul.f32 %v1204, 1.442695
    %v1206 = vpow.pop %v1205
    %v1207 = vmul.f32 %v1206, %v681
    %v1208 = vsel %vm683, %v1207, 0.0
    %1209 = vadd.xlane.f32.xlu0 %v1208
    %v1210 = vpop.xlane.xlu0 %1209
    %v1211 = vrot.slane %v1210, 4
    %v1212 = vadd.f32 %v1210, %v1211
    %v1213 = vrot.slane %v1212, 2
    %v1214 = vadd.f32 %v1212, %v1213
    %v1215 = vrot.slane %v1214, 1
    %v1216 = vadd.f32 %v1214, %v1215
    %s1217 = vtos %v1216
    %v1218 = vstv %s1186
    %v1219 = vlog2.pop %v1218
    %v1220 = vmul.f32 %v1219, 0.6931472
    %s1221 = vtos %v1220
    %s1222 = smul.f32 %s1221, 0.5
    %s1223 = sadd.f32 %s1222, 0.9189385
    %v1224 = vstv %s1217
    %v1225 = vlog2.pop %v1224
    %v1226 = vmul.f32 %v1225, 0.6931472
    %s1227 = vtos %v1226
    %s1228 = ssub.f32 %s1227, %s1223
    %s1229 = smax.f32 %s1228, 0.0
    %s1230 = ssub.f32 %s1228, %s1229
    %v1231 = vstv %s1230
    %v1232 = vmul.f32 %v1231, 1.442695
    %v1233 = vpow.pop %v1232
    %s1234 = vtos %v1233
    %s1235 = ssub.f32 0.0, %s1229
    %v1236 = vstv %s1235
    %v1237 = vmul.f32 %v1236, 1.442695
    %v1238 = vpow.pop %v1237
    %s1239 = vtos %v1238
    %s1240 = sadd.f32 %s1234, %s1239
    %v1241 = vstv %s1240
    %v1242 = vlog2.pop %v1241
    %v1243 = vmul.f32 %v1242, 0.6931472
    %s1244 = vtos %v1243
    %s1245 = sadd.f32 %s1229, %s1244
    %s1246 = ssub.f32 %s1245, %s1228
    %v1247 = vstv %s1246
    %v1248 = vmul.f32 %v1247, %v1157
    %s1249 = scalar_lea.smem [#allocation7], 3
    %1250 = sst [smem:[%s1249]] %s1181
    %s1251 = scalar_lea.smem [#allocation8], 3
    %1252 = sst [smem:[%s1251]] %s1195
    %s1253 = scalar_lea.smem [#allocation10], 3
    %1254 = sst [smem:[%s1253]] %s1245
    %s1255 = scalar_lea.smem [#allocation11], 3
    %1256 = sst [smem:[%s1255]] %s1246
    %v1257 = vpack.c.bf16 %v1248, %v1248
    %1258 = vmatprep.subr.bf16.mxu0 0
    %1259 = vmatpush1.bf16.msra.mxu0 %v816
    %1260 = vmatprep.subr.bf16.mxu0 0
    %1261 = vmatpush1.bf16.msra.mxu0 %v817
    %1262 = vmatprep.subr.bf16.mxu0 0
    %1263 = vmatpush1.bf16.msra.mxu0 %v818
    %1264 = vmatprep.subr.bf16.mxu0 0
    %1265 = vmatpush1.bf16.msra.mxu0 %v819
    %1266 = vmatprep.subr.bf16.mxu0 0
    %1267 = vmatpush1.bf16.msra.mxu0 %v820
    %1268 = vmatprep.subr.bf16.mxu0 0
    %1269 = vmatpush1.bf16.msra.mxu0 %v821
    %1270 = vmatprep.subr.bf16.mxu0 0
    %1271 = vmatpush1.bf16.msra.mxu0 %v822
    %1272 = vmatprep.subr.bf16.mxu0 0
    %1273 = vmatpush1.bf16.msra.mxu0 %v823
    %1274 = vmatprep.subr.bf16.mxu0 0
    %1275 = vmatpush1.bf16.msra.mxu0 0
    %1276 = vmatprep.subr.bf16.mxu0 0
    %1277 = vmatpush1.bf16.msra.mxu0 0
    %1278 = vmatprep.subr.bf16.mxu0 0
    %1279 = vmatpush1.bf16.msra.mxu0 0
    %1280 = vmatprep.subr.bf16.mxu0 0
    %1281 = vmatpush1.bf16.msra.mxu0 0
    %1282 = vmatprep.subr.bf16.mxu0 0
    %1283 = vmatpush1.bf16.msra.mxu0 0
    %1284 = vmatprep.subr.bf16.mxu0 0
    %1285 = vmatpush1.bf16.msra.mxu0 0
    %1286 = vmatprep.subr.bf16.mxu0 0
    %1287 = vmatpush1.bf16.msra.mxu0 0
    %1288 = vmatprep.subr.bf16.mxu0 0
    %1289 = vmatpush1.bf16.msra.mxu0 0
    %1290 = vmatprep.mubr.bf16.mxu0 0
    %1291 = vmatmul.mubr.bf16.gmra.mrb[0].mxu0 %v1257
    %v1292 = vpop.f32.mrb[0].mxu0
    %v1293 = vadd.f32 0.0, %v1292
    %v1294 = vpop.f32.mrb[0].mxu0
    %v1295 = vpop.f32.mrb[0].mxu0
    %v1296 = vpop.f32.mrb[0].mxu0
    %1297 = vdwg.mxu0
    %v1298 = vadd.f32 %v656, %v1293
    %v1299 = vtanh.pop %v1298
    %v1300 = vsel %vm683, %v1299, 0.0
    %1301 = vadd.xlane.f32.xlu0 %v1300
    %v1302 = vpop.xlane.xlu0 %1301
    %v1303 = vrot.slane %v1302, 4
    %v1304 = vadd.f32 %v1302, %v1303
    %v1305 = vrot.slane %v1304, 2
    %v1306 = vadd.f32 %v1304, %v1305
    %v1307 = vrot.slane %v1306, 1
    %v1308 = vadd.f32 %v1306, %v1307
    %s1309 = vtos %v1308
    %v1310 = vmul.f32 %v1299, %v1299
    %v1311 = vsel %vm683, %v1310, 0.0
    %1312 = vadd.xlane.f32.xlu0 %v1311
    %v1313 = vpop.xlane.xlu0 %1312
    %v1314 = vrot.slane %v1313, 4
    %v1315 = vadd.f32 %v1313, %v1314
    %v1316 = vrot.slane %v1315, 2
    %v1317 = vadd.f32 %v1315, %v1316
    %v1318 = vrot.slane %v1317, 1
    %v1319 = vadd.f32 %v1317, %v1318
    %s1320 = vtos %v1319
    %v1321 = vrcp.pop 200.0
    %s1322 = vtos %v1321
    %s1323 = smul.f32 %s1309, %s1322
    %s1324 = smul.f32 %s1309, %s1323
    %s1325 = ssub.f32 %s1320, %s1324
    %v1326 = vrcp.pop 199.0
    %s1327 = vtos %v1326
    %s1328 = smul.f32 %s1325, %s1327
    %v1329 = vstv %s1328
    %v1330 = vrsqrt.pop %v1329
    %v1331 = vmul.f32 %v1329, %v1330
    %vm1332 = vcmp.eq.f32.partialorder %v1329, inf
    %v1333 = vsel %vm1332, %v1329, %v1331
    %vm1334 = vcmp.eq.f32.partialorder %v1329, 0.0
    %v1335 = vand.u32 %v1329, 2147483648
    %v1336 = vsel %vm1334, %v1335, %v1333
    %s1337 = vtos %v1336
    %v1338 = vstv %s1323
    %v1339 = vsub.f32 %v1299, %v1338
    %v1340 = vmul.f32 %v1339, %v1339
    %v1341 = vstv %s1328
    %v1342 = vrcp.pop %v1341
    %s1343 = vtos %v1342
    %s1344 = smul.f32 -0.5, %s1343
    %v1345 = vstv %s1344
    %v1346 = vmul.f32 %v1340, %v1345
    %v1347 = vmul.f32 %v1346, 1.442695
    %v1348 = vpow.pop %v1347
    %v1349 = vmul.f32 %v1348, %v681
    %v1350 = vsel %vm683, %v1349, 0.0
    %1351 = vadd.xlane.f32.xlu0 %v1350
    %v1352 = vpop.xlane.xlu0 %1351
    %v1353 = vrot.slane %v1352, 4
    %v1354 = vadd.f32 %v1352, %v1353
    %v1355 = vrot.slane %v1354, 2
    %v1356 = vadd.f32 %v1354, %v1355
    %v1357 = vrot.slane %v1356, 1
    %v1358 = vadd.f32 %v1356, %v1357
    %s1359 = vtos %v1358
    %v1360 = vstv %s1328
    %v1361 = vlog2.pop %v1360
    %v1362 = vmul.f32 %v1361, 0.6931472
    %s1363 = vtos %v1362
    %s1364 = smul.f32 %s1363, 0.5
    %s1365 = sadd.f32 %s1364, 0.9189385
    %v1366 = vstv %s1359
    %v1367 = vlog2.pop %v1366
    %v1368 = vmul.f32 %v1367, 0.6931472
    %s1369 = vtos %v1368
    %s1370 = ssub.f32 %s1369, %s1365
    %s1371 = smax.f32 %s1370, 0.0
    %s1372 = ssub.f32 %s1370, %s1371
    %v1373 = vstv %s1372
    %v1374 = vmul.f32 %v1373, 1.442695
    %v1375 = vpow.pop %v1374
    %s1376 = vtos %v1375
    %s1377 = ssub.f32 0.0, %s1371
    %v1378 = vstv %s1377
    %v1379 = vmul.f32 %v1378, 1.442695
    %v1380 = vpow.pop %v1379
    %s1381 = vtos %v1380
    %s1382 = sadd.f32 %s1376, %s1381
    %v1383 = vstv %s1382
    %v1384 = vlog2.pop %v1383
    %v1385 = vmul.f32 %v1384, 0.6931472
    %s1386 = vtos %v1385
    %s1387 = sadd.f32 %s1371, %s1386
    %s1388 = ssub.f32 %s1387, %s1370
    %v1389 = vstv %s1388
    %v1390 = vmul.f32 %v1389, %v1299
    %s1391 = scalar_lea.smem [#allocation7], 4
    %1392 = sst [smem:[%s1391]] %s1323
    %s1393 = scalar_lea.smem [#allocation8], 4
    %1394 = sst [smem:[%s1393]] %s1337
    %s1395 = scalar_lea.smem [#allocation10], 4
    %1396 = sst [smem:[%s1395]] %s1387
    %s1397 = scalar_lea.smem [#allocation11], 4
    %1398 = sst [smem:[%s1397]] %s1388
    %v1399 = vld [vmem:[%s4] sm:$0xff]
    %v1400 = vld [vmem:[%s4 + $0x8] sm:$0xff]
    %v1401 = vld [vmem:[%s4 + $0x10] sm:$0xff]
    %v1402 = vld [vmem:[%s4 + $0x18] sm:$0xff]
    %v1403 = vld [vmem:[%s4 + $0x20] sm:$0xff]
    %v1404 = vld [vmem:[%s4 + $0x28] sm:$0xff]
    %v1405 = vld [vmem:[%s4 + $0x30] sm:$0xff]
    %v1406 = vld [vmem:[%s4 + $0x38] sm:$0xff]
    %v1407 = vld [vmem:[%s4 + $0x40] sm:$0xff]
    %v1408 = vld [vmem:[%s4 + $0x48] sm:$0xff]
    %v1409 = vld [vmem:[%s4 + $0x50] sm:$0xff]
    %v1410 = vld [vmem:[%s4 + $0x58] sm:$0xff]
    %v1411 = vld [vmem:[%s4 + $0x60] sm:$0xff]
    %v1412 = vld [vmem:[%s4 + $0x68] sm:$0xff]
    %v1413 = vld [vmem:[%s4 + $0x70] sm:$0xff]
    %v1414 = vld [vmem:[%s4 + $0x78] sm:$0xff]
    %v1415 = vld [vmem:[%s5] sm:$0x1]
    %v1417 = vlaneseq
    %v1418 = vshrl.u32 %v1417, 7
    %v1419 = vsub.s32 0, %v1418
    %v1420 = vrot.slane %v1415, %v1419
    %1422 = vmatprep.subr.mxu0 0.0
    %1423 = vmatpush1.msra.mxu0 %v1399
    %1424 = vmatprep.subr.mxu0 0.0
    %1425 = vmatpush1.msra.mxu0 %v1400
    %1426 = vmatprep.subr.mxu0 0.0
    %1427 = vmatpush1.msra.mxu0 %v1401
    %1428 = vmatprep.subr.mxu0 0.0
    %1429 = vmatpush1.msra.mxu0 %v1402
    %1430 = vmatprep.subr.mxu0 0.0
    %1431 = vmatpush1.msra.mxu0 %v1403
    %1432 = vmatprep.subr.mxu0 0.0
    %1433 = vmatpush1.msra.mxu0 %v1404
    %1434 = vmatprep.subr.mxu0 0.0
    %1435 = vmatpush1.msra.mxu0 %v1405
    %1436 = vmatprep.subr.mxu0 0.0
    %1437 = vmatpush1.msra.mxu0 %v1406
    %1438 = vmatprep.subr.mxu0 0.0
    %1439 = vmatpush1.msra.mxu0 %v1407
    %1440 = vmatprep.subr.mxu0 0.0
    %1441 = vmatpush1.msra.mxu0 %v1408
    %1442 = vmatprep.subr.mxu0 0.0
    %1443 = vmatpush1.msra.mxu0 %v1409
    %1444 = vmatprep.subr.mxu0 0.0
    %1445 = vmatpush1.msra.mxu0 %v1410
    %1446 = vmatprep.subr.mxu0 0.0
    %1447 = vmatpush1.msra.mxu0 %v1411
    %1448 = vmatprep.subr.mxu0 0.0
    %1449 = vmatpush1.msra.mxu0 %v1412
    %1450 = vmatprep.subr.mxu0 0.0
    %1451 = vmatpush1.msra.mxu0 %v1413
    %1452 = vmatprep.subr.mxu0 0.0
    %1453 = vmatpush1.msra.mxu0 %v1414
    %1454 = vmatprep.subr.mxu0 0.0
    %1455 = vmatpush1.msra.mxu0 0.0
    %1456 = vmatprep.subr.mxu0 0.0
    %1457 = vmatpush1.msra.mxu0 0.0
    %1458 = vmatprep.subr.mxu0 0.0
    %1459 = vmatpush1.msra.mxu0 0.0
    %1460 = vmatprep.subr.mxu0 0.0
    %1461 = vmatpush1.msra.mxu0 0.0
    %1462 = vmatprep.subr.mxu0 0.0
    %1463 = vmatpush1.msra.mxu0 0.0
    %1464 = vmatprep.subr.mxu0 0.0
    %1465 = vmatpush1.msra.mxu0 0.0
    %1466 = vmatprep.subr.mxu0 0.0
    %1467 = vmatpush1.msra.mxu0 0.0
    %1468 = vmatprep.subr.mxu0 0.0
    %1469 = vmatpush1.msra.mxu0 0.0
    %1470 = vmatprep.subr.mxu0 0.0
    %1471 = vmatpush1.msra.mxu0 0.0
    %1472 = vmatprep.subr.mxu0 0.0
    %1473 = vmatpush1.msra.mxu0 0.0
    %1474 = vmatprep.subr.mxu0 0.0
    %1475 = vmatpush1.msra.mxu0 0.0
    %1476 = vmatprep.subr.mxu0 0.0
    %1477 = vmatpush1.msra.mxu0 0.0
    %1478 = vmatprep.subr.mxu0 0.0
    %1479 = vmatpush1.msra.mxu0 0.0
    %1480 = vmatprep.subr.mxu0 0.0
    %1481 = vmatpush1.msra.mxu0 0.0
    %1482 = vmatprep.subr.mxu0 0.0
    %1483 = vmatpush1.msra.mxu0 0.0
    %1484 = vmatprep.subr.mxu0 0.0
    %1485 = vmatpush1.msra.mxu0 0.0
    %1486 = vmatprep.mubr.f32.mxu0 0.0
    %1487 = vmatmul.mubr.f32.gmra.mrb[0].mxu0 %v1390
    %v1488 = vpop.f32.mrb[0].mxu0
    %v1489 = vadd.f32 %v1420, %v1488
    %v1490 = vpop.f32.mrb[0].mxu0
    %1491 = vdwg.mxu0
    %vm1492 = vcmask 74752
    %v1493 = vsel %vm1492, %v1489, -inf
    %1494 = vmax.xlane.f32.xlu0 %v1493
    %v1495 = vpop.xlane.xlu0 %1494
    %v1496 = vsub.f32 %v1489, %v1495
    %v1497 = vmul.f32 %v1496, 1.442695
    %v1498 = vpow.pop %v1497
    %v1499 = vsel %vm1492, %v1498, 0.0
    %1500 = vadd.xlane.f32.xlu0 %v1499
    %v1501 = vpop.xlane.xlu0 %1500
    %v1502 = vlog2.pop %v1501
    %v1503 = vmul.f32 %v1502, 0.6931472
    %v1504 = vsub.f32 %v1496, %v1503
    %1505 = vst.msk [vmem:[#allocation6] sm:$0x3] %vm1492, %v1504
    // Predicated region
    $region30: #{tpu_custom_call.1} parent=1 // pred_check
      _
    $region31: #{tpu_custom_call.1} parent=1 // pred_check_branch
      %1507 = sbr.rel (0) target = $region33
    $region32: #{tpu_custom_call.1} parent=1 // pred_region
      %s1509 = ssub.s32 32, 32
      %1510 = vsyncadd [#allocation4], %s1509
      %s1512 = sshll.u32 [#allocation6], 4
      %s1513 = int_to_ptr.vmem [resolvable:$true] %s1512
      %1515 = dma.vmem_to_hbm [thread:$0]  %s1513, 32, %s6, [#allocation4]
    $region33: #{tpu_custom_call.1} parent=1 // pred_fallthru
      _
    // Predicated region
    $region34: #{tpu_custom_call.1} parent=1 // pred_check
      _
    $region35: #{tpu_custom_call.1} parent=1 // pred_check_branch
      %1517 = sbr.rel (0) target = $region37
    $region36: #{tpu_custom_call.1} parent=1 // pred_region
      %s1519 = ssub.s32 16, 16
      %1520 = vsyncadd [#allocation5], %s1519
      %1523 = dma.smem_to_hbm [#allocation7], 16, %s7, [#allocation5]
    $region37: #{tpu_custom_call.1} parent=1 // pred_fallthru
      _
    // Predicated region
    $region38: #{tpu_custom_call.1} parent=1 // pred_check
      _
    $region39: #{tpu_custom_call.1} parent=1 // pred_check_branch
      %1525 = sbr.rel (0) target = $region41
    $region40: #{tpu_custom_call.1} parent=1 // pred_region
      %s1527 = ssub.s32 16, 16
      %1528 = vsyncadd [#allocation9], %s1527
      %1531 = dma.smem_to_hbm [#allocation8], 16, %s8, [#allocation9]
    $region41: #{tpu_custom_call.1} parent=1 // pred_fallthru
      _
    // Predicated region
    $region42: #{tpu_custom_call.1} parent=1 // pred_check
      _
    $region43: #{tpu_custom_call.1} parent=1 // pred_check_branch
      %1533 = sbr.rel (0) target = $region45
    $region44: #{tpu_custom_call.1} parent=1 // pred_region
      %s1535 = ssub.s32 16, 16
      %1536 = vsyncadd [#allocation9], %s1535
      %1539 = dma.smem_to_hbm [#allocation10], 16, %s9, [#allocation9]
    $region45: #{tpu_custom_call.1} parent=1 // pred_fallthru
      _
    // Predicated region
    $region46: #{tpu_custom_call.1} parent=1 // pred_check
      _
    $region47: #{tpu_custom_call.1} parent=1 // pred_check_branch
      %1541 = sbr.rel (0) target = $region49
    $region48: #{tpu_custom_call.1} parent=1 // pred_region
      %s1543 = ssub.s32 16, 16
      %1544 = vsyncadd [#allocation12], %s1543
      %1547 = dma.smem_to_hbm [#allocation11], 16, %s10, [#allocation12]
    $region49: #{tpu_custom_call.1} parent=1 // pred_fallthru
      _
    // Predicated region
    $region50: #{tpu_custom_call.1} parent=1 // pred_check
      _
    $region51: #{tpu_custom_call.1} parent=1 // pred_check_branch
      %1549 = sbr.rel (0) target = $region53
    $region52: #{tpu_custom_call.1} parent=1 // pred_region
      %1550 = dma.done [#allocation4], 32
    $region53: #{tpu_custom_call.1} parent=1 // pred_fallthru
      _
    // Predicated region
    $region54: #{tpu_custom_call.1} parent=1 // pred_check
      _
    $region55: #{tpu_custom_call.1} parent=1 // pred_check_branch
      %1552 = sbr.rel (0) target = $region57
    $region56: #{tpu_custom_call.1} parent=1 // pred_region
      %1553 = dma.done [#allocation5], 16
    $region57: #{tpu_custom_call.1} parent=1 // pred_fallthru
      _
    // Predicated region
    $region58: #{tpu_custom_call.1} parent=1 // pred_check
      _
    $region59: #{tpu_custom_call.1} parent=1 // pred_check_branch
      %1555 = sbr.rel (0) target = $region61
    $region60: #{tpu_custom_call.1} parent=1 // pred_region
      %1556 = dma.done [#allocation9], 16
    $region61: #{tpu_custom_call.1} parent=1 // pred_fallthru
      _
    // Predicated region
    $region62: #{tpu_custom_call.1} parent=1 // pred_check
      _
    $region63: #{tpu_custom_call.1} parent=1 // pred_check_branch
      %1558 = sbr.rel (0) target = $region65
    $region64: #{tpu_custom_call.1} parent=1 // pred_region
      %1559 = dma.done [#allocation9], 16
    $region65: #{tpu_custom_call.1} parent=1 // pred_fallthru
      _
    // Predicated region
    $region66: #{tpu_custom_call.1} parent=1 // pred_check
      _
    $region67: #{tpu_custom_call.1} parent=1 // pred_check_branch
      %1561 = sbr.rel (0) target = $region69
    $region68: #{tpu_custom_call.1} parent=1 // pred_region
      %1562 = dma.done [#allocation12], 16
    $region69: #{tpu_custom_call.1} parent=1 // pred_fallthru
      _
    %1563 = sfence
    %1564 = vsyncpa [#allocation3], 1
    %1565 = vsyncpa [#allocation4], 1
    %1566 = vsyncpa [#allocation5], 1
    %1567 = vsyncpa [#allocation9], 1
    %1568 = vsyncpa [#allocation12], 1

</llo_original>
